<compile_context>
chip_gen: v6e
topology: v6e:2x2x1
jax: 0.10.0
libtpu: 0.0.40
codegen_flags: <defaults>
</compile_context>

<pallas_src>
import functools

import jax
import jax.numpy as jnp
from jax.experimental import pallas as pl
from jax.experimental.pallas import tpu as pltpu


def _round_up(x, m):
    return (x + m - 1) // m * m


# ------------------------------------------------------------------------------------
# Fused path (h resident in VMEM, read from HBM once): acc -> beta -> z in one kernel.
# Packed layout: h2[n, mi*d + j] = h[n, mi, j].
# ------------------------------------------------------------------------------------
def _fused_attention_kernel(h2_ref, wbd_ref, b_ref, attn_t_ref, gg_ref, g2_ref, z_ref,
                            *, n_valid, n_rows, d):
    f32 = jnp.float32

    # tanh(fc(h)) for all metapaths at once via the block-diagonal kron(I_M, W^T).
    t = jnp.tanh(jnp.dot(h2_ref[...], wbd_ref[...], preferred_element_type=f32)
                 + b_ref[...])
    acc = jnp.sum(t, axis=0, keepdims=True)                           # (1, M*d)
    if n_rows != n_valid:
        # Zero-padded node rows contribute tanh(bias); remove them in closed form.
        acc = acc - float(n_rows - n_valid) * jnp.tanh(b_ref[...])
    mean = acc * (1.0 / n_valid)                                      # (1, M*d)

    # Per-metapath logit, replicated across its own d-lane group:
    #   wg[0, m*d + j] = sum_k mean[0, m*d + k] * attn[0, k]
    s = mean * attn_t_ref[...]                                        # (1, M*d)
    s8 = jnp.broadcast_to(s, (8, s.shape[1]))                         # MXU-friendly rows
    wg = jnp.dot(s8, gg_ref[...], preferred_element_type=f32)[0:1, :]
    wg = wg - jnp.max(wg, axis=1, keepdims=True)
    e = jnp.exp(wg)
    # Softmax over the M groups (each group's value is replicated d times along lanes).
    beta_t = e * (float(d) / jnp.sum(e, axis=1, keepdims=True))       # (1, M*d)

    # z = sum_m beta[m] * h[:, m, :]  ==  (beta_tiled * h_packed) @ G2
    z_ref[...] = jnp.dot(beta_t * h2_ref[...], g2_ref[...],
                         preferred_element_type=f32).astype(z_ref.dtype)


# ------------------------------------------------------------------------------------
# Tiled fallback, pass 1: per-half partial sums of tanh(fc(h)) over node tiles.
# Grid = (2, nt_half): leading axis is "parallel" (v7x dual-TC) with independent output
# blocks (rows 0 and 8 of a (16, M*d) partials array); trailing axis is the reduction.
# ------------------------------------------------------------------------------------
def _beta_partial_kernel(h2_ref, wbd_ref, b_ref, part_ref):
    k = pl.program_id(1)

    @pl.when(k == 0)
    def _init():
        part_ref[...] = jnp.zeros_like(part_ref)

    t = jnp.tanh(jnp.dot(h2_ref[...], wbd_ref[...], preferred_element_type=jnp.float32)
                 + b_ref[...])
    part_ref[0:1, :] += jnp.sum(t, axis=0, keepdims=True)


# ------------------------------------------------------------------------------------
# Tiled fallback, pass 2: z tile = h2 tile @ (beta-weighted grouping matrix).
# ------------------------------------------------------------------------------------
def _combine_kernel(h2_ref, bg2_ref, z_ref):
    z_ref[...] = jnp.dot(h2_ref[...], bg2_ref[...],
                         preferred_element_type=jnp.float32).astype(z_ref.dtype)


# ------------------------------------------------------------------------------------
# Wrapper
# ------------------------------------------------------------------------------------
def attention_forward(h, fc_weight, fc_bias, attn, *, tile_n=1024,
                      max_resident_bytes=4 * 1024 * 1024):
    """Forward of Attention (eval mode).

    h: (N, M, d); fc_weight: (d, d) in PyTorch Linear layout (out, in); fc_bias: (d,);
    attn: (1, d).  Returns z: (N, d) float32.
    """
    n, m, d = h.shape
    md = m * d
    f32 = jnp.float32

    # Packed lane-dense view: h2[n, mi*d + j] = h[n, mi, j].  Contiguous reshape -> no
    # data movement, no transpose, no padding of d.
    h2 = h.astype(f32).reshape(n, md)

    # Small constant operands (resident in VMEM inside the kernels).
    w_bd = jnp.kron(jnp.eye(m, dtype=f32), fc_weight.astype(f32).T)    # (Md, Md)
    b_t = jnp.tile(fc_bias.astype(f32).reshape(1, d), (1, m))          # (1, Md)
    attn_row = attn.astype(f32).reshape(1, d)
    g2 = jnp.tile(jnp.eye(d, dtype=f32), (m, 1))                       # (Md, d)

    h2_bytes = n * md * 4

    if h2_bytes <= max_resident_bytes:
        # ---------------- fused single-pass path: h read from HBM exactly once -------
        attn_t = jnp.tile(attn_row, (1, m))                            # (1, Md)
        gg = jnp.kron(jnp.eye(m, dtype=f32), jnp.ones((d, d), f32))    # (Md, Md) groups

        n_rows = _round_up(n, 8)            # tiny sublane-alignment pad (<= 7 rows)
        h2_in = h2 if n_rows == n else jnp.pad(h2, ((0, n_rows - n), (0, 0)))

        # NOTE: if max_resident_bytes is raised (v5e/v6e have 128 MiB VMEM), raise this
        # limit with it; keep the total <= ~48 MiB on v7x (64 MiB physical VMEM).
        vmem_limit = 48 * 1024 * 1024

        z = pl.pallas_call(
            functools.partial(_fused_attention_kernel,
                              n_valid=n, n_rows=n_rows, d=d),
            out_shape=jax.ShapeDtypeStruct((n_rows, d), f32),
            in_specs=[pl.BlockSpec(memory_space=pltpu.MemorySpace.VMEM)
                      for _ in range(6)],
            out_specs=pl.BlockSpec(memory_space=pltpu.MemorySpace.VMEM),
            compiler_params=pltpu.CompilerParams(vmem_limit_bytes=vmem_limit),
        )(h2_in, w_bd, b_t, attn_t, gg, g2)
        return z if n_rows == n else z[:n]

    # ---------------- tiled two-pass fallback (large N): h streamed from HBM twice ----
    half = (n + 1) // 2
    tn = max(8, _round_up(min(int(tile_n), _round_up(half, 8)), 8))
    n_pad = _round_up(n, 2 * tn)            # even #tiles -> 2-way split of the beta pass
    nt = n_pad // tn
    nt_half = nt // 2

    h2_p = jnp.pad(h2, ((0, n_pad - n), (0, 0)))
    vmem_limit = 32 * 1024 * 1024

    partials = pl.pallas_call(
        _beta_partial_kernel,
        out_shape=jax.ShapeDtypeStruct((16, md), f32),
        grid_spec=pltpu.PrefetchScalarGridSpec(
            num_scalar_prefetch=0,
            grid=(2, nt_half),
            in_specs=[
                pl.BlockSpec((tn, md), lambda c, k: (c * nt_half + k, 0)),  # h tile
                pl.BlockSpec((md, md), lambda c, k: (0, 0)),                # kron(I, W^T)
                pl.BlockSpec((1, md), lambda c, k: (0, 0)),                 # tiled bias
            ],
            out_specs=pl.BlockSpec((8, md), lambda c, k: (c, 0)),           # per-core acc
        ),
        compiler_params=pltpu.CompilerParams(
            dimension_semantics=("parallel", "arbitrary"),
            vmem_limit_bytes=vmem_limit),
    )(h2_p, w_bd, b_t)

    # Tiny finalize in plain JAX: closed-form removal of the zero-padded rows, mean,
    # attention logits, softmax, and folding beta into the grouping matrix.
    acc = jnp.sum(partials, axis=0, keepdims=True)                     # (1, Md)
    acc = acc - (n_pad - n) * jnp.tanh(b_t)
    mean = acc / n
    w = jnp.sum(mean.reshape(m, d) * attn_row, axis=1, keepdims=True)  # (M, 1)
    beta = jax.nn.softmax(w, axis=0)                                   # (M, 1)
    bg2 = jnp.repeat(beta.reshape(m), d).reshape(md, 1) * g2           # (Md, d)

    z_pad = pl.pallas_call(
        _combine_kernel,
        out_shape=jax.ShapeDtypeStruct((n_pad, d), f32),
        grid_spec=pltpu.PrefetchScalarGridSpec(
            num_scalar_prefetch=0,
            grid=(nt,),
            in_specs=[
                pl.BlockSpec((tn, md), lambda i: (i, 0)),                   # h tile
                pl.BlockSpec((md, d), lambda i: (0, 0)),                    # beta * G2
            ],
            out_specs=pl.BlockSpec((tn, d), lambda i: (i, 0)),
        ),
        compiler_params=pltpu.CompilerParams(
            dimension_semantics=("parallel",),
            vmem_limit_bytes=vmem_limit),
    )(h2_p, bg2)
    return z_pad[:n]


# ------------------------------------------------------------------------------------
if __name__ == "__main__":
    key = jax.random.PRNGKey(0)
    n_nodes, n_meta, hidden_dim = 500, 4, 32

    k_h, k_w, k_b, k_a, k_h2 = jax.random.split(key, 5)

    # Parameter init mirroring Attention.reset_parameters (xavier_normal, gain=relu).
    gain = float(jnp.sqrt(2.0))
    std_fc = gain * (2.0 / (hidden_dim + hidden_dim)) ** 0.5
    fc_weight = std_fc * jax.random.normal(k_w, (hidden_dim, hidden_dim), jnp.float32)
    bound = 1.0 / hidden_dim ** 0.5
    fc_bias = jax.random.uniform(k_b, (hidden_dim,), jnp.float32, -bound, bound)
    std_attn = gain * (2.0 / (1 + hidden_dim)) ** 0.5
    attn = std_attn * jax.random.normal(k_a, (1, hidden_dim), jnp.float32)

    def reference(h_in):
        # Pure-JAX reference (eval mode: attn_drop is identity), full-precision matmuls.
        t_ref = jnp.tanh(jnp.einsum('nmd,ed->nme', h_in, fc_weight,
                                    precision=jax.lax.Precision.HIGHEST) + fc_bias)
        w_ref = jnp.einsum('md,od->mo', t_ref.mean(axis=0), attn,
                           precision=jax.lax.Precision.HIGHEST)
        beta_ref = jax.nn.softmax(w_ref, axis=0)
        return jnp.sum(beta_ref.reshape(1, n_meta, 1) * h_in, axis=1)

    # 1) Fused (h-resident) path — the common case.
    h = jax.random.normal(k_h, (n_nodes, n_meta, hidden_dim), jnp.float32)
    z = jax.jit(attention_forward)(h, fc_weight, fc_bias, attn)
    jax.block_until_ready(z)
    assert z.shape == (n_nodes, hidden_dim)
    assert bool(jnp.all(jnp.isfinite(z)))
    err_fused = float(jnp.max(jnp.abs(z - reference(h))))

    # 2) Tiled streaming path (forced by a zero residency budget) at a larger N,
    #    exercising the 2-way parallel beta reduction and padded-row correction.
    n_big = 2500
    h_big = jax.random.normal(k_h2, (n_big, n_meta, hidden_dim), jnp.float32)
    tiled_fwd = jax.jit(functools.partial(attention_forward, max_resident_bytes=0))
    z_big = tiled_fwd(h_big, fc_weight, fc_bias, attn)
    jax.block_until_ready(z_big)
    assert z_big.shape == (n_big, hidden_dim)
    assert bool(jnp.all(jnp.isfinite(z_big)))
    err_tiled = float(jnp.max(jnp.abs(z_big - reference(h_big))))

    if err_fused > 2e-2 or err_tiled > 2e-2:
        raise SystemExit(
            f"numerical mismatch: fused max err = {err_fused}, tiled max err = {err_tiled}")

    print("KERNEL_OK")
</pallas_src>

<mosaic_0001>
module attributes {stable_mosaic.version = 11 : i64} {
  func.func @_fused_attention_kernel(%arg0: memref<504x128xf32, #tpu.memory_space<vmem>>, %arg1: memref<128x128xf32, #tpu.memory_space<vmem>>, %arg2: memref<1x128xf32, #tpu.memory_space<vmem>>, %arg3: memref<1x128xf32, #tpu.memory_space<vmem>>, %arg4: memref<128x128xf32, #tpu.memory_space<vmem>>, %arg5: memref<128x32xf32, #tpu.memory_space<vmem>>, %arg6: memref<504x32xf32, #tpu.memory_space<vmem>>) attributes {dimension_semantics = [], scalar_prefetch = 0 : i64, scratch_operands = 0 : i64, tpu.core_type = #tpu.core_type<tc>} {
    %c0 = arith.constant 0 : index
    %c0_0 = arith.constant 0 : index
    %0 = vector.load %arg0[%c0, %c0_0] : memref<504x128xf32, #tpu.memory_space<vmem>>, vector<504x128xf32>
    %c0_1 = arith.constant 0 : index
    %c0_2 = arith.constant 0 : index
    %1 = vector.load %arg1[%c0_1, %c0_2] : memref<128x128xf32, #tpu.memory_space<vmem>>, vector<128x128xf32>
    %cst = arith.constant dense<0.000000e+00> : vector<504x128xf32>
    %2 = tpu.matmul %0, %1, %cst {dimension_numbers = #tpu.dot_dimension_numbers<[1], [0], [0], [1], [0, 0, 1, 1], [], []>} : vector<504x128xf32>, vector<128x128xf32>, vector<504x128xf32> -> vector<504x128xf32>
    %c0_3 = arith.constant 0 : index
    %c0_4 = arith.constant 0 : index
    %3 = vector.load %arg2[%c0_3, %c0_4] : memref<1x128xf32, #tpu.memory_space<vmem>>, vector<1x128xf32>
    %4 = vector.broadcast %3 : vector<1x128xf32> to vector<504x128xf32>
    %5 = arith.addf %2, %4 : vector<504x128xf32>
    %6 = math.tanh %5 : vector<504x128xf32>
    %cst_5 = arith.constant dense<0.000000e+00> : vector<128xf32>
    %7 = vector.multi_reduction <add>, %6, %cst_5 [0] : vector<504x128xf32> to vector<128xf32>
    %8 = vector.shape_cast %7 : vector<128xf32> to vector<1x128xf32>
    %c0_6 = arith.constant 0 : index
    %c0_7 = arith.constant 0 : index
    %9 = vector.load %arg2[%c0_6, %c0_7] : memref<1x128xf32, #tpu.memory_space<vmem>>, vector<1x128xf32>
    %10 = math.tanh %9 : vector<1x128xf32>
    %cst_8 = arith.constant 4.000000e+00 : f32
    %11 = vector.broadcast %cst_8 : f32 to vector<1x128xf32>
    %12 = arith.mulf %11, %10 : vector<1x128xf32>
    %13 = arith.subf %8, %12 : vector<1x128xf32>
    %cst_9 = arith.constant 2.000000e-03 : f32
    %14 = vector.broadcast %cst_9 : f32 to vector<1x128xf32>
    %15 = arith.mulf %13, %14 : vector<1x128xf32>
    %c0_10 = arith.constant 0 : index
    %c0_11 = arith.constant 0 : index
    %16 = vector.load %arg3[%c0_10, %c0_11] : memref<1x128xf32, #tpu.memory_space<vmem>>, vector<1x128xf32>
    %17 = arith.mulf %15, %16 : vector<1x128xf32>
    %18 = vector.shape_cast %17 : vector<1x128xf32> to vector<1x128xf32>
    %19 = vector.broadcast %18 : vector<1x128xf32> to vector<8x128xf32>
    %c0_12 = arith.constant 0 : index
    %c0_13 = arith.constant 0 : index
    %20 = vector.load %arg4[%c0_12, %c0_13] : memref<128x128xf32, #tpu.memory_space<vmem>>, vector<128x128xf32>
    %cst_14 = arith.constant dense<0.000000e+00> : vector<8x128xf32>
    %21 = tpu.matmul %19, %20, %cst_14 {dimension_numbers = #tpu.dot_dimension_numbers<[1], [0], [0], [1], [0, 0, 1, 1], [], []>} : vector<8x128xf32>, vector<128x128xf32>, vector<8x128xf32> -> vector<8x128xf32>
    %22 = vector.extract_strided_slice %21 {offsets = [0, 0], sizes = [1, 128], strides = [1, 1]} : vector<8x128xf32> to vector<1x128xf32>
    %cst_15 = arith.constant dense<0xFF800000> : vector<1xf32>
    %23 = vector.multi_reduction <maximumf>, %22, %cst_15 [1] : vector<1x128xf32> to vector<1xf32>
    %24 = vector.shape_cast %23 : vector<1xf32> to vector<1x1xf32>
    %25 = vector.broadcast %24 : vector<1x1xf32> to vector<1x128xf32>
    %26 = arith.subf %22, %25 : vector<1x128xf32>
    %27 = math.exp %26 : vector<1x128xf32>
    %cst_16 = arith.constant dense<0.000000e+00> : vector<1xf32>
    %28 = vector.multi_reduction <add>, %27, %cst_16 [1] : vector<1x128xf32> to vector<1xf32>
    %29 = vector.shape_cast %28 : vector<1xf32> to vector<1x1xf32>
    %cst_17 = arith.constant 3.200000e+01 : f32
    %30 = vector.broadcast %cst_17 : f32 to vector<1x1xf32>
    %31 = arith.divf %30, %29 : vector<1x1xf32>
    %32 = vector.broadcast %31 : vector<1x1xf32> to vector<1x128xf32>
    %33 = arith.mulf %27, %32 : vector<1x128xf32>
    %c0_18 = arith.constant 0 : index
    %c0_19 = arith.constant 0 : index
    %34 = vector.load %arg0[%c0_18, %c0_19] : memref<504x128xf32, #tpu.memory_space<vmem>>, vector<504x128xf32>
    %35 = vector.broadcast %33 : vector<1x128xf32> to vector<504x128xf32>
    %36 = arith.mulf %35, %34 : vector<504x128xf32>
    %c0_20 = arith.constant 0 : index
    %c0_21 = arith.constant 0 : index
    %37 = vector.load %arg5[%c0_20, %c0_21] : memref<128x32xf32, #tpu.memory_space<vmem>>, vector<128x32xf32>
    %cst_22 = arith.constant dense<0.000000e+00> : vector<504x32xf32>
    %38 = tpu.matmul %36, %37, %cst_22 {dimension_numbers = #tpu.dot_dimension_numbers<[1], [0], [0], [1], [0, 0, 1, 1], [], []>} : vector<504x128xf32>, vector<128x32xf32>, vector<504x32xf32> -> vector<504x32xf32>
    %c0_23 = arith.constant 0 : index
    %c0_24 = arith.constant 0 : index
    %39 = vector.load %arg6[%c0_23, %c0_24] : memref<504x32xf32, #tpu.memory_space<vmem>>, vector<504x32xf32>
    tpu.vector_store %arg6[%c0_23, %c0_24], %38 {strides = array<i32>} : memref<504x32xf32, #tpu.memory_space<vmem>>, vector<504x32xf32>,
    return
  }
}

</mosaic_0001>

<llo_original>
// kernel: mul.21
$region0: #{mul.21}
  #allocation0 [shape = 's32[1]{0}', space=sflag, size = 0x4, scoped, tag = 'scoped memory for mul.21']
  %s0 = inlined_call_operand.vmem [shape: f32[128,128], index: 0, kind: input, shape index: {}]
  %s1 = inlined_call_operand.vmem [shape: f32[128,128], index: 1, kind: input, shape index: {}]
  %s2 = inlined_call_operand.vmem [shape: f32[128,128], index: 2, kind: output, shape index: {}]
  %v3 = vld [vmem:[%s0] sm:$0xff]
  %v4 = vld [vmem:[%s1] sm:$0xff]
  %5 = xla_tuple %v3, %v4
  %6 = xla_tuple %5
  %v7 = vmul.f32 %v3, %v4
  %8 = xla_tuple %v7
  %9 = vst [vmem:[%s2] sm:$0xff] %v7
  %s10 = scalar_lea.vmem %s0, 8
  %v11 = vld [vmem:[%s10] sm:$0xff]
  %s12 = scalar_lea.vmem %s1, 8
  %v13 = vld [vmem:[%s12] sm:$0xff]
  %14 = xla_tuple %v11, %v13
  %15 = xla_tuple %14
  %v16 = vmul.f32 %v11, %v13
  %17 = xla_tuple %v16
  %s18 = scalar_lea.vmem %s2, 8
  %19 = vst [vmem:[%s18] sm:$0xff] %v16
  %s20 = scalar_lea.vmem %s0, 16
  %v21 = vld [vmem:[%s20] sm:$0xff]
  %s22 = scalar_lea.vmem %s1, 16
  %v23 = vld [vmem:[%s22] sm:$0xff]
  %24 = xla_tuple %v21, %v23
  %25 = xla_tuple %24
  %v26 = vmul.f32 %v21, %v23
  %27 = xla_tuple %v26
  %s28 = scalar_lea.vmem %s2, 16
  %29 = vst [vmem:[%s28] sm:$0xff] %v26
  %s30 = scalar_lea.vmem %s0, 24
  %v31 = vld [vmem:[%s30] sm:$0xff]
  %s32 = scalar_lea.vmem %s1, 24
  %v33 = vld [vmem:[%s32] sm:$0xff]
  %34 = xla_tuple %v31, %v33
  %35 = xla_tuple %34
  %v36 = vmul.f32 %v31, %v33
  %37 = xla_tuple %v36
  %s38 = scalar_lea.vmem %s2, 24
  %39 = vst [vmem:[%s38] sm:$0xff] %v36
  %s40 = scalar_lea.vmem %s0, 32
  %v41 = vld [vmem:[%s40] sm:$0xff]
  %s42 = scalar_lea.vmem %s1, 32
  %v43 = vld [vmem:[%s42] sm:$0xff]
  %44 = xla_tuple %v41, %v43
  %45 = xla_tuple %44
  %v46 = vmul.f32 %v41, %v43
  %47 = xla_tuple %v46
  %s48 = scalar_lea.vmem %s2, 32
  %49 = vst [vmem:[%s48] sm:$0xff] %v46
  %s50 = scalar_lea.vmem %s0, 40
  %v51 = vld [vmem:[%s50] sm:$0xff]
  %s52 = scalar_lea.vmem %s1, 40
  %v53 = vld [vmem:[%s52] sm:$0xff]
  %54 = xla_tuple %v51, %v53
  %55 = xla_tuple %54
  %v56 = vmul.f32 %v51, %v53
  %57 = xla_tuple %v56
  %s58 = scalar_lea.vmem %s2, 40
  %59 = vst [vmem:[%s58] sm:$0xff] %v56
  %s60 = scalar_lea.vmem %s0, 48
  %v61 = vld [vmem:[%s60] sm:$0xff]
  %s62 = scalar_lea.vmem %s1, 48
  %v63 = vld [vmem:[%s62] sm:$0xff]
  %64 = xla_tuple %v61, %v63
  %65 = xla_tuple %64
  %v66 = vmul.f32 %v61, %v63
  %67 = xla_tuple %v66
  %s68 = scalar_lea.vmem %s2, 48
  %69 = vst [vmem:[%s68] sm:$0xff] %v66
  %s70 = scalar_lea.vmem %s0, 56
  %v71 = vld [vmem:[%s70] sm:$0xff]
  %s72 = scalar_lea.vmem %s1, 56
  %v73 = vld [vmem:[%s72] sm:$0xff]
  %74 = xla_tuple %v71, %v73
  %75 = xla_tuple %74
  %v76 = vmul.f32 %v71, %v73
  %77 = xla_tuple %v76
  %s78 = scalar_lea.vmem %s2, 56
  %79 = vst [vmem:[%s78] sm:$0xff] %v76
  %s80 = scalar_lea.vmem %s0, 64
  %v81 = vld [vmem:[%s80] sm:$0xff]
  %s82 = scalar_lea.vmem %s1, 64
  %v83 = vld [vmem:[%s82] sm:$0xff]
  %84 = xla_tuple %v81, %v83
  %85 = xla_tuple %84
  %v86 = vmul.f32 %v81, %v83
  %87 = xla_tuple %v86
  %s88 = scalar_lea.vmem %s2, 64
  %89 = vst [vmem:[%s88] sm:$0xff] %v86
  %s90 = scalar_lea.vmem %s0, 72
  %v91 = vld [vmem:[%s90] sm:$0xff]
  %s92 = scalar_lea.vmem %s1, 72
  %v93 = vld [vmem:[%s92] sm:$0xff]
  %94 = xla_tuple %v91, %v93
  %95 = xla_tuple %94
  %v96 = vmul.f32 %v91, %v93
  %97 = xla_tuple %v96
  %s98 = scalar_lea.vmem %s2, 72
  %99 = vst [vmem:[%s98] sm:$0xff] %v96
  %s100 = scalar_lea.vmem %s0, 80
  %v101 = vld [vmem:[%s100] sm:$0xff]
  %s102 = scalar_lea.vmem %s1, 80
  %v103 = vld [vmem:[%s102] sm:$0xff]
  %104 = xla_tuple %v101, %v103
  %105 = xla_tuple %104
  %v106 = vmul.f32 %v101, %v103
  %107 = xla_tuple %v106
  %s108 = scalar_lea.vmem %s2, 80
  %109 = vst [vmem:[%s108] sm:$0xff] %v106
  %s110 = scalar_lea.vmem %s0, 88
  %v111 = vld [vmem:[%s110] sm:$0xff]
  %s112 = scalar_lea.vmem %s1, 88
  %v113 = vld [vmem:[%s112] sm:$0xff]
  %114 = xla_tuple %v111, %v113
  %115 = xla_tuple %114
  %v116 = vmul.f32 %v111, %v113
  %117 = xla_tuple %v116
  %s118 = scalar_lea.vmem %s2, 88
  %119 = vst [vmem:[%s118] sm:$0xff] %v116
  %s120 = scalar_lea.vmem %s0, 96
  %v121 = vld [vmem:[%s120] sm:$0xff]
  %s122 = scalar_lea.vmem %s1, 96
  %v123 = vld [vmem:[%s122] sm:$0xff]
  %124 = xla_tuple %v121, %v123
  %125 = xla_tuple %124
  %v126 = vmul.f32 %v121, %v123
  %127 = xla_tuple %v126
  %s128 = scalar_lea.vmem %s2, 96
  %129 = vst [vmem:[%s128] sm:$0xff] %v126
  %s130 = scalar_lea.vmem %s0, 104
  %v131 = vld [vmem:[%s130] sm:$0xff]
  %s132 = scalar_lea.vmem %s1, 104
  %v133 = vld [vmem:[%s132] sm:$0xff]
  %134 = xla_tuple %v131, %v133
  %135 = xla_tuple %134
  %v136 = vmul.f32 %v131, %v133
  %137 = xla_tuple %v136
  %s138 = scalar_lea.vmem %s2, 104
  %139 = vst [vmem:[%s138] sm:$0xff] %v136
  %s140 = scalar_lea.vmem %s0, 112
  %v141 = vld [vmem:[%s140] sm:$0xff]
  %s142 = scalar_lea.vmem %s1, 112
  %v143 = vld [vmem:[%s142] sm:$0xff]
  %144 = xla_tuple %v141, %v143
  %145 = xla_tuple %144
  %v146 = vmul.f32 %v141, %v143
  %147 = xla_tuple %v146
  %s148 = scalar_lea.vmem %s2, 112
  %149 = vst [vmem:[%s148] sm:$0xff] %v146
  %s150 = scalar_lea.vmem %s0, 120
  %v151 = vld [vmem:[%s150] sm:$0xff]
  %s152 = scalar_lea.vmem %s1, 120
  %v153 = vld [vmem:[%s152] sm:$0xff]
  %154 = xla_tuple %v151, %v153
  %155 = xla_tuple %154
  %v156 = vmul.f32 %v151, %v153
  %157 = xla_tuple %v156
  %s158 = scalar_lea.vmem %s2, 120
  %159 = vst [vmem:[%s158] sm:$0xff] %v156

// kernel: attention_forward.1
$region0: #{attention_forward.1}
  #allocation0 [shape = 'u32[]', space=smem, size = 0x4, offset = 0x4, fixed_abs, tag = 'smem constant byte address 0x4 - core index']
  #allocation1 [shape = 'u32[144,128]{1,0:T(1,128)}', space=vmem, size = 0x12000, scoped, tag = 'internal scratch']
  %s0 = inlined_call_operand.vmem [shape: f32[504,128], index: 0, kind: input, shape index: {}]
  %s1 = inlined_call_operand.vmem [shape: f32[128,128], index: 1, kind: input, shape index: {}]
  %s2 = inlined_call_operand.vmem [shape: f32[1,128], index: 2, kind: input, shape index: {}]
  %s3 = inlined_call_operand.vmem [shape: f32[1,128], index: 3, kind: input, shape index: {}]
  %s4 = inlined_call_operand.vmem [shape: f32[128,128], index: 4, kind: input, shape index: {}]
  %s5 = inlined_call_operand.vmem [shape: f32[128,32], index: 5, kind: input, shape index: {}]
  %s6 = inlined_call_operand.vmem [shape: f32[504,32], index: 6, kind: output, shape index: {}]
  %s7 = sld [smem:[#allocation0]]
  $region34: #{attention_forward.1} parent=0
    _
  %s9 = ssub.s32 1, %s7
  %s10 = scalar_select 0, %s9, %s7
  // Predicated region
  $region2: #{attention_forward.1} parent=0 // pred_check
    _
  $region3: #{attention_forward.1} parent=0 // pred_check_branch
    %12 = sbr.rel (0) target = $region5
  $region4: #{attention_forward.1} parent=0 // pred_region
    _
  $region5: #{attention_forward.1} parent=0 // pred_fallthru
    _
  // Predicated region
  $region6: #{attention_forward.1} parent=0 // pred_check
    _
  $region7: #{attention_forward.1} parent=0 // pred_check_branch
    %14 = sbr.rel (0) target = $region9
  $region8: #{attention_forward.1} parent=0 // pred_region
    _
  $region9: #{attention_forward.1} parent=0 // pred_fallthru
    _
  // Predicated region
  $region10: #{attention_forward.1} parent=0 // pred_check
    _
  $region11: #{attention_forward.1} parent=0 // pred_check_branch
    %16 = sbr.rel (0) target = $region13
  $region12: #{attention_forward.1} parent=0 // pred_region
    _
  $region13: #{attention_forward.1} parent=0 // pred_fallthru
    _
  // Predicated region
  $region14: #{attention_forward.1} parent=0 // pred_check
    _
  $region15: #{attention_forward.1} parent=0 // pred_check_branch
    %18 = sbr.rel (0) target = $region17
  $region16: #{attention_forward.1} parent=0 // pred_region
    _
  $region17: #{attention_forward.1} parent=0 // pred_fallthru
    _
  // Predicated region
  $region18: #{attention_forward.1} parent=0 // pred_check
    _
  $region19: #{attention_forward.1} parent=0 // pred_check_branch
    %20 = sbr.rel (0) target = $region21
  $region20: #{attention_forward.1} parent=0 // pred_region
    _
  $region21: #{attention_forward.1} parent=0 // pred_fallthru
    _
  // Predicated region
  $region22: #{attention_forward.1} parent=0 // pred_check
    _
  $region23: #{attention_forward.1} parent=0 // pred_check_branch
    %22 = sbr.rel (0) target = $region25
  $region24: #{attention_forward.1} parent=0 // pred_region
    _
  $region25: #{attention_forward.1} parent=0 // pred_fallthru
    _
  %v23 = vld [vmem:[%s0] sm:$0xff]
  %v24 = vld [vmem:[%s0 + $0x8] sm:$0xff]
  %v25 = vld [vmem:[%s0 + $0x10] sm:$0xff]
  %v26 = vld [vmem:[%s0 + $0x18] sm:$0xff]
  %v27 = vld [vmem:[%s0 + $0x20] sm:$0xff]
  %v28 = vld [vmem:[%s0 + $0x28] sm:$0xff]
  %v29 = vld [vmem:[%s0 + $0x30] sm:$0xff]
  %v30 = vld [vmem:[%s0 + $0x38] sm:$0xff]
  %v31 = vld [vmem:[%s0 + $0x40] sm:$0xff]
  %v32 = vld [vmem:[%s0 + $0x48] sm:$0xff]
  %v33 = vld [vmem:[%s0 + $0x50] sm:$0xff]
  %v34 = vld [vmem:[%s0 + $0x58] sm:$0xff]
  %v35 = vld [vmem:[%s0 + $0x60] sm:$0xff]
  %v36 = vld [vmem:[%s0 + $0x68] sm:$0xff]
  %v37 = vld [vmem:[%s0 + $0x70] sm:$0xff]
  %v38 = vld [vmem:[%s0 + $0x78] sm:$0xff]
  %v39 = vld [vmem:[%s0 + $0x80] sm:$0xff]
  %v40 = vld [vmem:[%s0 + $0x88] sm:$0xff]
  %v41 = vld [vmem:[%s0 + $0x90] sm:$0xff]
  %v42 = vld [vmem:[%s0 + $0x98] sm:$0xff]
  %v43 = vld [vmem:[%s0 + $0xa0] sm:$0xff]
  %v44 = vld [vmem:[%s0 + $0xa8] sm:$0xff]
  %v45 = vld [vmem:[%s0 + $0xb0] sm:$0xff]
  %v46 = vld [vmem:[%s0 + $0xb8] sm:$0xff]
  %v47 = vld [vmem:[%s0 + $0xc0] sm:$0xff]
  %v48 = vld [vmem:[%s0 + $0xc8] sm:$0xff]
  %v49 = vld [vmem:[%s0 + $0xd0] sm:$0xff]
  %v50 = vld [vmem:[%s0 + $0xd8] sm:$0xff]
  %v51 = vld [vmem:[%s0 + $0xe0] sm:$0xff]
  %v52 = vld [vmem:[%s0 + $0xe8] sm:$0xff]
  %v53 = vld [vmem:[%s0 + $0xf0] sm:$0xff]
  %v54 = vld [vmem:[%s0 + $0xf8] sm:$0xff]
  %v55 = vld [vmem:[%s0 + $0x100] sm:$0xff]
  %v56 = vld [vmem:[%s0 + $0x108] sm:$0xff]
  %v57 = vld [vmem:[%s0 + $0x110] sm:$0xff]
  %v58 = vld [vmem:[%s0 + $0x118] sm:$0xff]
  %v59 = vld [vmem:[%s0 + $0x120] sm:$0xff]
  %v60 = vld [vmem:[%s0 + $0x128] sm:$0xff]
  %v61 = vld [vmem:[%s0 + $0x130] sm:$0xff]
  %v62 = vld [vmem:[%s0 + $0x138] sm:$0xff]
  %v63 = vld [vmem:[%s0 + $0x140] sm:$0xff]
  %v64 = vld [vmem:[%s0 + $0x148] sm:$0xff]
  %v65 = vld [vmem:[%s0 + $0x150] sm:$0xff]
  %v66 = vld [vmem:[%s0 + $0x158] sm:$0xff]
  %v67 = vld [vmem:[%s0 + $0x160] sm:$0xff]
  %v68 = vld [vmem:[%s0 + $0x168] sm:$0xff]
  %v69 = vld [vmem:[%s0 + $0x170] sm:$0xff]
  %v70 = vld [vmem:[%s0 + $0x178] sm:$0xff]
  %v71 = vld [vmem:[%s0 + $0x180] sm:$0xff]
  %v72 = vld [vmem:[%s0 + $0x188] sm:$0xff]
  %v73 = vld [vmem:[%s0 + $0x190] sm:$0xff]
  %v74 = vld [vmem:[%s0 + $0x198] sm:$0xff]
  %v75 = vld [vmem:[%s0 + $0x1a0] sm:$0xff]
  %v76 = vld [vmem:[%s0 + $0x1a8] sm:$0xff]
  %v77 = vld [vmem:[%s0 + $0x1b0] sm:$0xff]
  %v78 = vld [vmem:[%s0 + $0x1b8] sm:$0xff]
  %v79 = vld [vmem:[%s0 + $0x1c0] sm:$0xff]
  %v80 = vld [vmem:[%s0 + $0x1c8] sm:$0xff]
  %v81 = vld [vmem:[%s0 + $0x1d0] sm:$0xff]
  %v82 = vld [vmem:[%s0 + $0x1d8] sm:$0xff]
  %v83 = vld [vmem:[%s0 + $0x1e0] sm:$0xff]
  %v84 = vld [vmem:[%s0 + $0x1e8] sm:$0xff]
  %v85 = vld [vmem:[%s0 + $0x1f0] sm:$0xff]
  %v86 = vld [vmem:[%s1] sm:$0xff]
  %v87 = vld [vmem:[%s1 + $0x8] sm:$0xff]
  %v88 = vld [vmem:[%s1 + $0x10] sm:$0xff]
  %v89 = vld [vmem:[%s1 + $0x18] sm:$0xff]
  %v90 = vld [vmem:[%s1 + $0x20] sm:$0xff]
  %v91 = vld [vmem:[%s1 + $0x28] sm:$0xff]
  %v92 = vld [vmem:[%s1 + $0x30] sm:$0xff]
  %v93 = vld [vmem:[%s1 + $0x38] sm:$0xff]
  %v94 = vld [vmem:[%s1 + $0x40] sm:$0xff]
  %v95 = vld [vmem:[%s1 + $0x48] sm:$0xff]
  %v96 = vld [vmem:[%s1 + $0x50] sm:$0xff]
  %v97 = vld [vmem:[%s1 + $0x58] sm:$0xff]
  %v98 = vld [vmem:[%s1 + $0x60] sm:$0xff]
  %v99 = vld [vmem:[%s1 + $0x68] sm:$0xff]
  %v100 = vld [vmem:[%s1 + $0x70] sm:$0xff]
  %v101 = vld [vmem:[%s1 + $0x78] sm:$0xff]
  %v102 = vld [vmem:[%s2] sm:$0x1]
  %v104 = vlaneseq
  %v105 = vshrl.u32 %v104, 7
  %v106 = vsub.s32 0, %v105
  %v107 = vrot.slane %v102, %v106
  %109 = vmatprep.subr.mxu0 0.0
  %110 = vmatpush1.msra.mxu0 %v101
  %111 = vmatprep.subr.mxu0 0.0
  %112 = vmatpush1.msra.mxu0 %v100
  %113 = vmatprep.subr.mxu0 0.0
  %114 = vmatpush1.msra.mxu0 %v99
  %115 = vmatprep.subr.mxu0 0.0
  %116 = vmatpush1.msra.mxu0 %v98
  %117 = vmatprep.subr.mxu0 0.0
  %118 = vmatpush1.msra.mxu0 %v97
  %119 = vmatprep.subr.mxu0 0.0
  %120 = vmatpush1.msra.mxu0 %v96
  %121 = vmatprep.subr.mxu0 0.0
  %122 = vmatpush1.msra.mxu0 %v95
  %123 = vmatprep.subr.mxu0 0.0
  %124 = vmatpush1.msra.mxu0 %v94
  %125 = vmatprep.subr.mxu0 0.0
  %126 = vmatpush1.msra.mxu0 %v93
  %127 = vmatprep.subr.mxu0 0.0
  %128 = vmatpush1.msra.mxu0 %v92
  %129 = vmatprep.subr.mxu0 0.0
  %130 = vmatpush1.msra.mxu0 %v91
  %131 = vmatprep.subr.mxu0 0.0
  %132 = vmatpush1.msra.mxu0 %v90
  %133 = vmatprep.subr.mxu0 0.0
  %134 = vmatpush1.msra.mxu0 %v89
  %135 = vmatprep.subr.mxu0 0.0
  %136 = vmatpush1.msra.mxu0 %v88
  %137 = vmatprep.subr.mxu0 0.0
  %138 = vmatpush1.msra.mxu0 %v87
  %139 = vmatprep.subr.mxu0 0.0
  %140 = vmatpush1.msra.mxu0 %v86
  %141 = vmatprep.subr.mxu0 0.0
  %142 = vmatpush2.msra.mxu0 0.0
  %143 = vmatprep.subr.mxu0 0.0
  %144 = vmatpush2.msra.mxu0 0.0
  %145 = vmatprep.subr.mxu0 0.0
  %146 = vmatpush2.msra.mxu0 0.0
  %147 = vmatprep.subr.mxu0 0.0
  %148 = vmatpush2.msra.mxu0 0.0
  %149 = vmatprep.subr.mxu0 0.0
  %150 = vmatpush2.msra.mxu0 0.0
  %151 = vmatprep.subr.mxu0 0.0
  %152 = vmatpush2.msra.mxu0 0.0
  %153 = vmatprep.subr.mxu0 0.0
  %154 = vmatpush2.msra.mxu0 0.0
  %155 = vmatprep.subr.mxu0 0.0
  %156 = vmatpush2.msra.mxu0 0.0
  %157 = vmatprep.subr.mxu0 0.0
  %158 = vmatpush2.msra.mxu0 0.0
  %159 = vmatprep.subr.mxu0 0.0
  %160 = vmatpush2.msra.mxu0 0.0
  %161 = vmatprep.subr.mxu0 0.0
  %162 = vmatpush2.msra.mxu0 0.0
  %163 = vmatprep.subr.mxu0 0.0
  %164 = vmatpush2.msra.mxu0 0.0
  %165 = vmatprep.subr.mxu0 0.0
  %166 = vmatpush2.msra.mxu0 0.0
  %167 = vmatprep.subr.mxu0 0.0
  %168 = vmatpush2.msra.mxu0 0.0
  %169 = vmatprep.subr.mxu0 0.0
  %170 = vmatpush2.msra.mxu0 0.0
  %171 = vmatprep.subr.mxu0 0.0
  %172 = vmatpush2.msra.mxu0 0.0
  %173 = vmatprep.mubr.f32.mxu0 0.0
  %174 = vmatmul.mubr.f32.gmra.mxu0 %v23
  %v175 = vpop.f32.mrf.mxu0
  %v176 = vadd.f32 %v107, %v175
  %v177 = vpop.f32.mrf.mxu0
  %178 = vmatprep.mubr.f32.mxu0 0.0
  %179 = vmatmul.mubr.f32.gmra.mxu0 %v24
  %v180 = vpop.f32.mrf.mxu0
  %v181 = vadd.f32 %v107, %v180
  %v182 = vpop.f32.mrf.mxu0
  %183 = vmatprep.mubr.f32.mxu0 0.0
  %184 = vmatmul.mubr.f32.gmra.mxu0 %v25
  %v185 = vpop.f32.mrf.mxu0
  %v186 = vadd.f32 %v107, %v185
  %v187 = vpop.f32.mrf.mxu0
  %188 = vmatprep.mubr.f32.mxu0 0.0
  %189 = vmatmul.mubr.f32.gmra.mxu0 %v26
  %v190 = vpop.f32.mrf.mxu0
  %v191 = vadd.f32 %v107, %v190
  %v192 = vpop.f32.mrf.mxu0
  %193 = vmatprep.mubr.f32.mxu0 0.0
  %194 = vmatmul.mubr.f32.gmra.mxu0 %v27
  %v195 = vpop.f32.mrf.mxu0
  %v196 = vadd.f32 %v107, %v195
  %v197 = vpop.f32.mrf.mxu0
  %198 = vmatprep.mubr.f32.mxu0 0.0
  %199 = vmatmul.mubr.f32.gmra.mxu0 %v28
  %v200 = vpop.f32.mrf.mxu0
  %v201 = vadd.f32 %v107, %v200
  %v202 = vpop.f32.mrf.mxu0
  %203 = vmatprep.mubr.f32.mxu0 0.0
  %204 = vmatmul.mubr.f32.gmra.mxu0 %v29
  %v205 = vpop.f32.mrf.mxu0
  %v206 = vadd.f32 %v107, %v205
  %v207 = vpop.f32.mrf.mxu0
  %208 = vmatprep.mubr.f32.mxu0 0.0
  %209 = vmatmul.mubr.f32.gmra.mxu0 %v30
  %v210 = vpop.f32.mrf.mxu0
  %v211 = vadd.f32 %v107, %v210
  %v212 = vpop.f32.mrf.mxu0
  %213 = vmatprep.mubr.f32.mxu0 0.0
  %214 = vmatmul.mubr.f32.gmra.mxu0 %v31
  %v215 = vpop.f32.mrf.mxu0
  %v216 = vadd.f32 %v107, %v215
  %v217 = vpop.f32.mrf.mxu0
  %218 = vmatprep.mubr.f32.mxu0 0.0
  %219 = vmatmul.mubr.f32.gmra.mxu0 %v32
  %v220 = vpop.f32.mrf.mxu0
  %v221 = vadd.f32 %v107, %v220
  %v222 = vpop.f32.mrf.mxu0
  %223 = vmatprep.mubr.f32.mxu0 0.0
  %224 = vmatmul.mubr.f32.gmra.mxu0 %v33
  %v225 = vpop.f32.mrf.mxu0
  %v226 = vadd.f32 %v107, %v225
  %v227 = vpop.f32.mrf.mxu0
  %228 = vmatprep.mubr.f32.mxu0 0.0
  %229 = vmatmul.mubr.f32.gmra.mxu0 %v34
  %v230 = vpop.f32.mrf.mxu0
  %v231 = vadd.f32 %v107, %v230
  %v232 = vpop.f32.mrf.mxu0
  %233 = vmatprep.mubr.f32.mxu0 0.0
  %234 = vmatmul.mubr.f32.gmra.mxu0 %v35
  %v235 = vpop.f32.mrf.mxu0
  %v236 = vadd.f32 %v107, %v235
  %v237 = vpop.f32.mrf.mxu0
  %238 = vmatprep.mubr.f32.mxu0 0.0
  %239 = vmatmul.mubr.f32.gmra.mxu0 %v36
  %v240 = vpop.f32.mrf.mxu0
  %v241 = vadd.f32 %v107, %v240
  %v242 = vpop.f32.mrf.mxu0
  %243 = vmatprep.mubr.f32.mxu0 0.0
  %244 = vmatmul.mubr.f32.gmra.mxu0 %v37
  %v245 = vpop.f32.mrf.mxu0
  %v246 = vadd.f32 %v107, %v245
  %v247 = vpop.f32.mrf.mxu0
  %248 = vmatprep.mubr.f32.mxu0 0.0
  %249 = vmatmul.mubr.f32.gmra.mxu0 %v38
  %v250 = vpop.f32.mrf.mxu0
  %v251 = vadd.f32 %v107, %v250
  %v252 = vpop.f32.mrf.mxu0
  %253 = vmatprep.mubr.f32.mxu0 0.0
  %254 = vmatmul.mubr.f32.gmra.mxu0 %v39
  %v255 = vpop.f32.mrf.mxu0
  %v256 = vadd.f32 %v107, %v255
  %v257 = vpop.f32.mrf.mxu0
  %258 = vmatprep.mubr.f32.mxu0 0.0
  %259 = vmatmul.mubr.f32.gmra.mxu0 %v40
  %v260 = vpop.f32.mrf.mxu0
  %v261 = vadd.f32 %v107, %v260
  %v262 = vpop.f32.mrf.mxu0
  %263 = vmatprep.mubr.f32.mxu0 0.0
  %264 = vmatmul.mubr.f32.gmra.mxu0 %v41
  %v265 = vpop.f32.mrf.mxu0
  %v266 = vadd.f32 %v107, %v265
  %v267 = vpop.f32.mrf.mxu0
  %268 = vmatprep.mubr.f32.mxu0 0.0
  %269 = vmatmul.mubr.f32.gmra.mxu0 %v42
  %v270 = vpop.f32.mrf.mxu0
  %v271 = vadd.f32 %v107, %v270
  %v272 = vpop.f32.mrf.mxu0
  %273 = vmatprep.mubr.f32.mxu0 0.0
  %274 = vmatmul.mubr.f32.gmra.mxu0 %v43
  %v275 = vpop.f32.mrf.mxu0
  %v276 = vadd.f32 %v107, %v275
  %v277 = vpop.f32.mrf.mxu0
  %278 = vmatprep.mubr.f32.mxu0 0.0
  %279 = vmatmul.mubr.f32.gmra.mxu0 %v44
  %v280 = vpop.f32.mrf.mxu0
  %v281 = vadd.f32 %v107, %v280
  %v282 = vpop.f32.mrf.mxu0
  %283 = vmatprep.mubr.f32.mxu0 0.0
  %284 = vmatmul.mubr.f32.gmra.mxu0 %v45
  %v285 = vpop.f32.mrf.mxu0
  %v286 = vadd.f32 %v107, %v285
  %v287 = vpop.f32.mrf.mxu0
  %288 = vmatprep.mubr.f32.mxu0 0.0
  %289 = vmatmul.mubr.f32.gmra.mxu0 %v46
  %v290 = vpop.f32.mrf.mxu0
  %v291 = vadd.f32 %v107, %v290
  %v292 = vpop.f32.mrf.mxu0
  %293 = vmatprep.mubr.f32.mxu0 0.0
  %294 = vmatmul.mubr.f32.gmra.mxu0 %v47
  %v295 = vpop.f32.mrf.mxu0
  %v296 = vadd.f32 %v107, %v295
  %v297 = vpop.f32.mrf.mxu0
  %298 = vmatprep.mubr.f32.mxu0 0.0
  %299 = vmatmul.mubr.f32.gmra.mxu0 %v48
  %v300 = vpop.f32.mrf.mxu0
  %v301 = vadd.f32 %v107, %v300
  %v302 = vpop.f32.mrf.mxu0
  %303 = vmatprep.mubr.f32.mxu0 0.0
  %304 = vmatmul.mubr.f32.gmra.mxu0 %v49
  %v305 = vpop.f32.mrf.mxu0
  %v306 = vadd.f32 %v107, %v305
  %v307 = vpop.f32.mrf.mxu0
  %308 = vmatprep.mubr.f32.mxu0 0.0
  %309 = vmatmul.mubr.f32.gmra.mxu0 %v50
  %v310 = vpop.f32.mrf.mxu0
  %v311 = vadd.f32 %v107, %v310
  %v312 = vpop.f32.mrf.mxu0
  %313 = vmatprep.mubr.f32.mxu0 0.0
  %314 = vmatmul.mubr.f32.gmra.mxu0 %v51
  %v315 = vpop.f32.mrf.mxu0
  %v316 = vadd.f32 %v107, %v315
  %v317 = vpop.f32.mrf.mxu0
  %318 = vmatprep.mubr.f32.mxu0 0.0
  %319 = vmatmul.mubr.f32.gmra.mxu0 %v52
  %v320 = vpop.f32.mrf.mxu0
  %v321 = vadd.f32 %v107, %v320
  %v322 = vpop.f32.mrf.mxu0
  %323 = vmatprep.mubr.f32.mxu0 0.0
  %324 = vmatmul.mubr.f32.gmra.mxu0 %v53
  %v325 = vpop.f32.mrf.mxu0
  %v326 = vadd.f32 %v107, %v325
  %v327 = vpop.f32.mrf.mxu0
  %328 = vmatprep.mubr.f32.mxu0 0.0
  %329 = vmatmul.mubr.f32.gmra.mxu0 %v54
  %v330 = vpop.f32.mrf.mxu0
  %v331 = vadd.f32 %v107, %v330
  %v332 = vpop.f32.mrf.mxu0
  %333 = vmatprep.mubr.f32.mxu0 0.0
  %334 = vmatmul.mubr.f32.gmra.mxu0 %v55
  %v335 = vpop.f32.mrf.mxu0
  %v336 = vadd.f32 %v107, %v335
  %v337 = vpop.f32.mrf.mxu0
  %338 = vmatprep.mubr.f32.mxu0 0.0
  %339 = vmatmul.mubr.f32.gmra.mxu0 %v56
  %v340 = vpop.f32.mrf.mxu0
  %v341 = vadd.f32 %v107, %v340
  %v342 = vpop.f32.mrf.mxu0
  %343 = vmatprep.mubr.f32.mxu0 0.0
  %344 = vmatmul.mubr.f32.gmra.mxu0 %v57
  %v345 = vpop.f32.mrf.mxu0
  %v346 = vadd.f32 %v107, %v345
  %v347 = vpop.f32.mrf.mxu0
  %348 = vmatprep.mubr.f32.mxu0 0.0
  %349 = vmatmul.mubr.f32.gmra.mxu0 %v58
  %v350 = vpop.f32.mrf.mxu0
  %v351 = vadd.f32 %v107, %v350
  %v352 = vpop.f32.mrf.mxu0
  %353 = vmatprep.mubr.f32.mxu0 0.0
  %354 = vmatmul.mubr.f32.gmra.mxu0 %v59
  %v355 = vpop.f32.mrf.mxu0
  %v356 = vadd.f32 %v107, %v355
  %v357 = vpop.f32.mrf.mxu0
  %358 = vmatprep.mubr.f32.mxu0 0.0
  %359 = vmatmul.mubr.f32.gmra.mxu0 %v60
  %v360 = vpop.f32.mrf.mxu0
  %v361 = vadd.f32 %v107, %v360
  %v362 = vpop.f32.mrf.mxu0
  %363 = vmatprep.mubr.f32.mxu0 0.0
  %364 = vmatmul.mubr.f32.gmra.mxu0 %v61
  %v365 = vpop.f32.mrf.mxu0
  %v366 = vadd.f32 %v107, %v365
  %v367 = vpop.f32.mrf.mxu0
  %368 = vmatprep.mubr.f32.mxu0 0.0
  %369 = vmatmul.mubr.f32.gmra.mxu0 %v62
  %v370 = vpop.f32.mrf.mxu0
  %v371 = vadd.f32 %v107, %v370
  %v372 = vpop.f32.mrf.mxu0
  %373 = vmatprep.mubr.f32.mxu0 0.0
  %374 = vmatmul.mubr.f32.gmra.mxu0 %v63
  %v375 = vpop.f32.mrf.mxu0
  %v376 = vadd.f32 %v107, %v375
  %v377 = vpop.f32.mrf.mxu0
  %378 = vmatprep.mubr.f32.mxu0 0.0
  %379 = vmatmul.mubr.f32.gmra.mxu0 %v64
  %v380 = vpop.f32.mrf.mxu0
  %v381 = vadd.f32 %v107, %v380
  %v382 = vpop.f32.mrf.mxu0
  %383 = vmatprep.mubr.f32.mxu0 0.0
  %384 = vmatmul.mubr.f32.gmra.mxu0 %v65
  %v385 = vpop.f32.mrf.mxu0
  %v386 = vadd.f32 %v107, %v385
  %v387 = vpop.f32.mrf.mxu0
  %388 = vmatprep.mubr.f32.mxu0 0.0
  %389 = vmatmul.mubr.f32.gmra.mxu0 %v66
  %v390 = vpop.f32.mrf.mxu0
  %v391 = vadd.f32 %v107, %v390
  %v392 = vpop.f32.mrf.mxu0
  %393 = vmatprep.mubr.f32.mxu0 0.0
  %394 = vmatmul.mubr.f32.gmra.mxu0 %v67
  %v395 = vpop.f32.mrf.mxu0
  %v396 = vadd.f32 %v107, %v395
  %v397 = vpop.f32.mrf.mxu0
  %398 = vmatprep.mubr.f32.mxu0 0.0
  %399 = vmatmul.mubr.f32.gmra.mxu0 %v68
  %v400 = vpop.f32.mrf.mxu0
  %v401 = vadd.f32 %v107, %v400
  %v402 = vpop.f32.mrf.mxu0
  %403 = vmatprep.mubr.f32.mxu0 0.0
  %404 = vmatmul.mubr.f32.gmra.mxu0 %v69
  %v405 = vpop.f32.mrf.mxu0
  %v406 = vadd.f32 %v107, %v405
  %v407 = vpop.f32.mrf.mxu0
  %408 = vmatprep.mubr.f32.mxu0 0.0
  %409 = vmatmul.mubr.f32.gmra.mxu0 %v70
  %v410 = vpop.f32.mrf.mxu0
  %v411 = vadd.f32 %v107, %v410
  %v412 = vpop.f32.mrf.mxu0
  %413 = vmatprep.mubr.f32.mxu0 0.0
  %414 = vmatmul.mubr.f32.gmra.mxu0 %v71
  %v415 = vpop.f32.mrf.mxu0
  %v416 = vadd.f32 %v107, %v415
  %v417 = vpop.f32.mrf.mxu0
  %418 = vmatprep.mubr.f32.mxu0 0.0
  %419 = vmatmul.mubr.f32.gmra.mxu0 %v72
  %v420 = vpop.f32.mrf.mxu0
  %v421 = vadd.f32 %v107, %v420
  %v422 = vpop.f32.mrf.mxu0
  %423 = vmatprep.mubr.f32.mxu0 0.0
  %424 = vmatmul.mubr.f32.gmra.mxu0 %v73
  %v425 = vpop.f32.mrf.mxu0
  %v426 = vadd.f32 %v107, %v425
  %v427 = vpop.f32.mrf.mxu0
  %428 = vmatprep.mubr.f32.mxu0 0.0
  %429 = vmatmul.mubr.f32.gmra.mxu0 %v74
  %v430 = vpop.f32.mrf.mxu0
  %v431 = vadd.f32 %v107, %v430
  %v432 = vpop.f32.mrf.mxu0
  %433 = vmatprep.mubr.f32.mxu0 0.0
  %434 = vmatmul.mubr.f32.gmra.mxu0 %v75
  %v435 = vpop.f32.mrf.mxu0
  %v436 = vadd.f32 %v107, %v435
  %v437 = vpop.f32.mrf.mxu0
  %438 = vmatprep.mubr.f32.mxu0 0.0
  %439 = vmatmul.mubr.f32.gmra.mxu0 %v76
  %v440 = vpop.f32.mrf.mxu0
  %v441 = vadd.f32 %v107, %v440
  %v442 = vpop.f32.mrf.mxu0
  %443 = vmatprep.mubr.f32.mxu0 0.0
  %444 = vmatmul.mubr.f32.gmra.mxu0 %v77
  %v445 = vpop.f32.mrf.mxu0
  %v446 = vadd.f32 %v107, %v445
  %v447 = vpop.f32.mrf.mxu0
  %448 = vmatprep.mubr.f32.mxu0 0.0
  %449 = vmatmul.mubr.f32.gmra.mxu0 %v78
  %v450 = vpop.f32.mrf.mxu0
  %v451 = vadd.f32 %v107, %v450
  %v452 = vpop.f32.mrf.mxu0
  %453 = vmatprep.mubr.f32.mxu0 0.0
  %454 = vmatmul.mubr.f32.gmra.mxu0 %v79
  %v455 = vpop.f32.mrf.mxu0
  %v456 = vadd.f32 %v107, %v455
  %v457 = vpop.f32.mrf.mxu0
  %458 = vmatprep.mubr.f32.mxu0 0.0
  %459 = vmatmul.mubr.f32.gmra.mxu0 %v80
  %v460 = vpop.f32.mrf.mxu0
  %v461 = vadd.f32 %v107, %v460
  %v462 = vpop.f32.mrf.mxu0
  %463 = vmatprep.mubr.f32.mxu0 0.0
  %464 = vmatmul.mubr.f32.gmra.mxu0 %v81
  %v465 = vpop.f32.mrf.mxu0
  %v466 = vadd.f32 %v107, %v465
  %v467 = vpop.f32.mrf.mxu0
  %468 = vmatprep.mubr.f32.mxu0 0.0
  %469 = vmatmul.mubr.f32.gmra.mxu0 %v82
  %v470 = vpop.f32.mrf.mxu0
  %v471 = vadd.f32 %v107, %v470
  %v472 = vpop.f32.mrf.mxu0
  %473 = vmatprep.mubr.f32.mxu0 0.0
  %474 = vmatmul.mubr.f32.gmra.mxu0 %v83
  %v475 = vpop.f32.mrf.mxu0
  %v476 = vadd.f32 %v107, %v475
  %v477 = vpop.f32.mrf.mxu0
  %478 = vmatprep.mubr.f32.mxu0 0.0
  %479 = vmatmul.mubr.f32.gmra.mxu0 %v84
  %v480 = vpop.f32.mrf.mxu0
  %v481 = vadd.f32 %v107, %v480
  %v482 = vpop.f32.mrf.mxu0
  %483 = vmatprep.mubr.f32.mxu0 0.0
  %484 = vmatmul.mubr.f32.gmra.mxu0 %v85
  %v485 = vpop.f32.mrf.mxu0
  %v486 = vadd.f32 %v107, %v485
  %v487 = vpop.f32.mrf.mxu0
  %488 = vdwg.mxu0
  %v489 = vtanh.pop %v176
  %v490 = vtanh.pop %v181
  %v491 = vtanh.pop %v186
  %v492 = vtanh.pop %v191
  %v493 = vtanh.pop %v196
  %v494 = vtanh.pop %v201
  %v495 = vtanh.pop %v206
  %v496 = vtanh.pop %v211
  %v497 = vtanh.pop %v216
  %v498 = vtanh.pop %v221
  %v499 = vtanh.pop %v226
  %v500 = vtanh.pop %v231
  %v501 = vtanh.pop %v236
  %v502 = vtanh.pop %v241
  %v503 = vtanh.pop %v246
  %v504 = vtanh.pop %v251
  %v505 = vtanh.pop %v256
  %v506 = vtanh.pop %v261
  %v507 = vtanh.pop %v266
  %v508 = vtanh.pop %v271
  %v509 = vtanh.pop %v276
  %v510 = vtanh.pop %v281
  %v511 = vtanh.pop %v286
  %v512 = vtanh.pop %v291
  %v513 = vtanh.pop %v296
  %v514 = vtanh.pop %v301
  %v515 = vtanh.pop %v306
  %v516 = vtanh.pop %v311
  %v517 = vtanh.pop %v316
  %v518 = vtanh.pop %v321
  %v519 = vtanh.pop %v326
  %v520 = vtanh.pop %v331
  %v521 = vtanh.pop %v336
  %v522 = vtanh.pop %v341
  %v523 = vtanh.pop %v346
  %v524 = vtanh.pop %v351
  %v525 = vtanh.pop %v356
  %v526 = vtanh.pop %v361
  %v527 = vtanh.pop %v366
  %v528 = vtanh.pop %v371
  %v529 = vtanh.pop %v376
  %v530 = vtanh.pop %v381
  %v531 = vtanh.pop %v386
  %v532 = vtanh.pop %v391
  %v533 = vtanh.pop %v396
  %v534 = vtanh.pop %v401
  %v535 = vtanh.pop %v406
  %v536 = vtanh.pop %v411
  %v537 = vtanh.pop %v416
  %v538 = vtanh.pop %v421
  %v539 = vtanh.pop %v426
  %v540 = vtanh.pop %v431
  %v541 = vtanh.pop %v436
  %v542 = vtanh.pop %v441
  %v543 = vtanh.pop %v446
  %v544 = vtanh.pop %v451
  %v545 = vtanh.pop %v456
  %v546 = vtanh.pop %v461
  %v547 = vtanh.pop %v466
  %v548 = vtanh.pop %v471
  %v549 = vtanh.pop %v476
  %v550 = vtanh.pop %v481
  %v551 = vtanh.pop %v486
  %v552 = vadd.f32 %v489, %v490
  %v553 = vadd.f32 %v552, %v491
  %v554 = vadd.f32 %v553, %v492
  %v555 = vadd.f32 %v554, %v493
  %v556 = vadd.f32 %v555, %v494
  %v557 = vadd.f32 %v556, %v495
  %v558 = vadd.f32 %v557, %v496
  %v559 = vadd.f32 %v558, %v497
  %v560 = vadd.f32 %v559, %v498
  %v561 = vadd.f32 %v560, %v499
  %v562 = vadd.f32 %v561, %v500
  %v563 = vadd.f32 %v562, %v501
  %v564 = vadd.f32 %v563, %v502
  %v565 = vadd.f32 %v564, %v503
  %v566 = vadd.f32 %v565, %v504
  %v567 = vadd.f32 %v566, %v505
  %v568 = vadd.f32 %v567, %v506
  %v569 = vadd.f32 %v568, %v507
  %v570 = vadd.f32 %v569, %v508
  %v571 = vadd.f32 %v570, %v509
  %v572 = vadd.f32 %v571, %v510
  %v573 = vadd.f32 %v572, %v511
  %v574 = vadd.f32 %v573, %v512
  %v575 = vadd.f32 %v574, %v513
  %v576 = vadd.f32 %v575, %v514
  %v577 = vadd.f32 %v576, %v515
  %v578 = vadd.f32 %v577, %v516
  %v579 = vadd.f32 %v578, %v517
  %v580 = vadd.f32 %v579, %v518
  %v581 = vadd.f32 %v580, %v519
  %v582 = vadd.f32 %v581, %v520
  %v583 = vadd.f32 %v582, %v521
  %v584 = vadd.f32 %v583, %v522
  %v585 = vadd.f32 %v584, %v523
  %v586 = vadd.f32 %v585, %v524
  %v587 = vadd.f32 %v586, %v525
  %v588 = vadd.f32 %v587, %v526
  %v589 = vadd.f32 %v588, %v527
  %v590 = vadd.f32 %v589, %v528
  %v591 = vadd.f32 %v590, %v529
  %v592 = vadd.f32 %v591, %v530
  %v593 = vadd.f32 %v592, %v531
  %v594 = vadd.f32 %v593, %v532
  %v595 = vadd.f32 %v594, %v533
  %v596 = vadd.f32 %v595, %v534
  %v597 = vadd.f32 %v596, %v535
  %v598 = vadd.f32 %v597, %v536
  %v599 = vadd.f32 %v598, %v537
  %v600 = vadd.f32 %v599, %v538
  %v601 = vadd.f32 %v600, %v539
  %v602 = vadd.f32 %v601, %v540
  %v603 = vadd.f32 %v602, %v541
  %v604 = vadd.f32 %v603, %v542
  %v605 = vadd.f32 %v604, %v543
  %v606 = vadd.f32 %v605, %v544
  %v607 = vadd.f32 %v606, %v545
  %v608 = vadd.f32 %v607, %v546
  %v609 = vadd.f32 %v608, %v547
  %v610 = vadd.f32 %v609, %v548
  %v611 = vadd.f32 %v610, %v549
  %v612 = vadd.f32 %v611, %v550
  %v613 = vadd.f32 %v612, %v551
  %v614 = vrot.slane %v613, 4
  %v615 = vadd.f32 %v613, %v614
  %v616 = vrot.slane %v615, 2
  %v617 = vadd.f32 %v615, %v616
  %v618 = vrot.slane %v617, 1
  %v619 = vadd.f32 %v617, %v618
  %v620 = vtanh.pop %v102
  %v621 = vmul.f32 %v620, 4.0
  %v622 = vsub.f32 %v619, %v621
  %v623 = vmul.f32 %v622, 0.002
  %v624 = vld [vmem:[%s3] sm:$0x1]
  %v625 = vmul.f32 %v623, %v624
  %v626 = vlaneseq
  %v627 = vshrl.u32 %v626, 7
  %v628 = vsub.s32 0, %v627
  %v629 = vrot.slane %v625, %v628
  %v630 = vld [vmem:[%s4] sm:$0xff]
  %v631 = vld [vmem:[%s4 + $0x8] sm:$0xff]
  %v632 = vld [vmem:[%s4 + $0x10] sm:$0xff]
  %v633 = vld [vmem:[%s4 + $0x18] sm:$0xff]
  %v634 = vld [vmem:[%s4 + $0x20] sm:$0xff]
  %v635 = vld [vmem:[%s4 + $0x28] sm:$0xff]
  %v636 = vld [vmem:[%s4 + $0x30] sm:$0xff]
  %v637 = vld [vmem:[%s4 + $0x38] sm:$0xff]
  %v638 = vld [vmem:[%s4 + $0x40] sm:$0xff]
  %v639 = vld [vmem:[%s4 + $0x48] sm:$0xff]
  %v640 = vld [vmem:[%s4 + $0x50] sm:$0xff]
  %v641 = vld [vmem:[%s4 + $0x58] sm:$0xff]
  %v642 = vld [vmem:[%s4 + $0x60] sm:$0xff]
  %v643 = vld [vmem:[%s4 + $0x68] sm:$0xff]
  %v644 = vld [vmem:[%s4 + $0x70] sm:$0xff]
  %v645 = vld [vmem:[%s4 + $0x78] sm:$0xff]
  %646 = vmatprep.subr.mxu0 0.0
  %647 = vmatpush1.msra.mxu0 %v645
  %648 = vmatprep.subr.mxu0 0.0
  %649 = vmatpush1.msra.mxu0 %v644
  %650 = vmatprep.subr.mxu0 0.0
  %651 = vmatpush1.msra.mxu0 %v643
  %652 = vmatprep.subr.mxu0 0.0
  %653 = vmatpush1.msra.mxu0 %v642
  %654 = vmatprep.subr.mxu0 0.0
  %655 = vmatpush1.msra.mxu0 %v641
  %656 = vmatprep.subr.mxu0 0.0
  %657 = vmatpush1.msra.mxu0 %v640
  %658 = vmatprep.subr.mxu0 0.0
  %659 = vmatpush1.msra.mxu0 %v639
  %660 = vmatprep.subr.mxu0 0.0
  %661 = vmatpush1.msra.mxu0 %v638
  %662 = vmatprep.subr.mxu0 0.0
  %663 = vmatpush1.msra.mxu0 %v637
  %664 = vmatprep.subr.mxu0 0.0
  %665 = vmatpush1.msra.mxu0 %v636
  %666 = vmatprep.subr.mxu0 0.0
  %667 = vmatpush1.msra.mxu0 %v635
  %668 = vmatprep.subr.mxu0 0.0
  %669 = vmatpush1.msra.mxu0 %v634
  %670 = vmatprep.subr.mxu0 0.0
  %671 = vmatpush1.msra.mxu0 %v633
  %672 = vmatprep.subr.mxu0 0.0
  %673 = vmatpush1.msra.mxu0 %v632
  %674 = vmatprep.subr.mxu0 0.0
  %675 = vmatpush1.msra.mxu0 %v631
  %676 = vmatprep.subr.mxu0 0.0
  %677 = vmatpush1.msra.mxu0 %v630
  %678 = vmatprep.subr.mxu0 0.0
  %679 = vmatpush2.msra.mxu0 0.0
  %680 = vmatprep.subr.mxu0 0.0
  %681 = vmatpush2.msra.mxu0 0.0
  %682 = vmatprep.subr.mxu0 0.0
  %683 = vmatpush2.msra.mxu0 0.0
  %684 = vmatprep.subr.mxu0 0.0
  %685 = vmatpush2.msra.mxu0 0.0
  %686 = vmatprep.subr.mxu0 0.0
  %687 = vmatpush2.msra.mxu0 0.0
  %688 = vmatprep.subr.mxu0 0.0
  %689 = vmatpush2.msra.mxu0 0.0
  %690 = vmatprep.subr.mxu0 0.0
  %691 = vmatpush2.msra.mxu0 0.0
  %692 = vmatprep.subr.mxu0 0.0
  %693 = vmatpush2.msra.mxu0 0.0
  %694 = vmatprep.subr.mxu0 0.0
  %695 = vmatpush2.msra.mxu0 0.0
  %696 = vmatprep.subr.mxu0 0.0
  %697 = vmatpush2.msra.mxu0 0.0
  %698 = vmatprep.subr.mxu0 0.0
  %699 = vmatpush2.msra.mxu0 0.0
  %700 = vmatprep.subr.mxu0 0.0
  %701 = vmatpush2.msra.mxu0 0.0
  %702 = vmatprep.subr.mxu0 0.0
  %703 = vmatpush2.msra.mxu0 0.0
  %704 = vmatprep.subr.mxu0 0.0
  %705 = vmatpush2.msra.mxu0 0.0
  %706 = vmatprep.subr.mxu0 0.0
  %707 = vmatpush2.msra.mxu0 0.0
  %708 = vmatprep.subr.mxu0 0.0
  %709 = vmatpush2.msra.mxu0 0.0
  %710 = vmatprep.mubr.f32.mxu0 0.0
  %711 = vmatmul.mubr.f32.gmra.mxu0 %v629
  %v712 = vpop.f32.mrf.mxu0
  %v713 = vadd.f32 0.0, %v712
  %v714 = vpop.f32.mrf.mxu0
  %715 = vdwg.mxu0
  %vm716 = vcmask 1040384
  %v717 = vsel %vm716, %v713, -inf
  %718 = vmax.xlane.f32.xlu0 %v717
  %v719 = vpop.xlane.xlu0 %718
  %v720 = vsub.f32 %v713, %v719
  %v721 = vmul.f32 %v720, 1.442695
  %v722 = vpow.pop %v721
  %v723 = vsel %vm716, %v722, 0.0
  %724 = vadd.xlane.f32.xlu0 %v723
  %v725 = vpop.xlane.xlu0 %724
  %v726 = vrcp.pop %v725
  %v727 = vmul.f32 32.0, %v726
  %v728 = vmul.f32 %v722, %v727
  %v729 = vlaneseq
  %v730 = vshrl.u32 %v729, 7
  %v731 = vsub.s32 0, %v730
  %v732 = vrot.slane %v728, %v731
  %v733 = vmul.f32 %v732, %v23
  %v734 = vmul.f32 %v732, %v24
  %v735 = vmul.f32 %v732, %v25
  %v736 = vmul.f32 %v732, %v26
  %v737 = vmul.f32 %v732, %v27
  %v738 = vmul.f32 %v732, %v28
  %v739 = vmul.f32 %v732, %v29
  %v740 = vmul.f32 %v732, %v30
  %v741 = vmul.f32 %v732, %v31
  %v742 = vmul.f32 %v732, %v32
  %v743 = vmul.f32 %v732, %v33
  %v744 = vmul.f32 %v732, %v34
  %v745 = vmul.f32 %v732, %v35
  %v746 = vmul.f32 %v732, %v36
  %v747 = vmul.f32 %v732, %v37
  %v748 = vmul.f32 %v732, %v38
  %v749 = vmul.f32 %v732, %v39
  %v750 = vmul.f32 %v732, %v40
  %v751 = vmul.f32 %v732, %v41
  %v752 = vmul.f32 %v732, %v42
  %v753 = vmul.f32 %v732, %v43
  %v754 = vmul.f32 %v732, %v44
  %v755 = vmul.f32 %v732, %v45
  %v756 = vmul.f32 %v732, %v46
  %v757 = vmul.f32 %v732, %v47
  %v758 = vmul.f32 %v732, %v48
  %v759 = vmul.f32 %v732, %v49
  %v760 = vmul.f32 %v732, %v50
  %v761 = vmul.f32 %v732, %v51
  %v762 = vmul.f32 %v732, %v52
  %v763 = vmul.f32 %v732, %v53
  %v764 = vmul.f32 %v732, %v54
  %v765 = vmul.f32 %v732, %v55
  %v766 = vmul.f32 %v732, %v56
  %v767 = vmul.f32 %v732, %v57
  %v768 = vmul.f32 %v732, %v58
  %v769 = vmul.f32 %v732, %v59
  %v770 = vmul.f32 %v732, %v60
  %v771 = vmul.f32 %v732, %v61
  %v772 = vmul.f32 %v732, %v62
  %v773 = vmul.f32 %v732, %v63
  %v774 = vmul.f32 %v732, %v64
  %v775 = vmul.f32 %v732, %v65
  %v776 = vmul.f32 %v732, %v66
  %v777 = vmul.f32 %v732, %v67
  %v778 = vmul.f32 %v732, %v68
  %v779 = vmul.f32 %v732, %v69
  %v780 = vmul.f32 %v732, %v70
  %v781 = vmul.f32 %v732, %v71
  %v782 = vmul.f32 %v732, %v72
  %v783 = vmul.f32 %v732, %v73
  %v784 = vmul.f32 %v732, %v74
  %v785 = vmul.f32 %v732, %v75
  %v786 = vmul.f32 %v732, %v76
  %v787 = vmul.f32 %v732, %v77
  %v788 = vmul.f32 %v732, %v78
  %v789 = vmul.f32 %v732, %v79
  %v790 = vmul.f32 %v732, %v80
  %v791 = vmul.f32 %v732, %v81
  %v792 = vmul.f32 %v732, %v82
  %v793 = vmul.f32 %v732, %v83
  %v794 = vmul.f32 %v732, %v84
  %v795 = vmul.f32 %v732, %v85
  %v796 = vld [vmem:[%s5] sm:$0xff]
  %v797 = vld [vmem:[%s5 + $0x8] sm:$0xff]
  %v798 = vld [vmem:[%s5 + $0x10] sm:$0xff]
  %v799 = vld [vmem:[%s5 + $0x18] sm:$0xff]
  %v800 = vld [vmem:[%s5 + $0x20] sm:$0xff]
  %v801 = vld [vmem:[%s5 + $0x28] sm:$0xff]
  %v802 = vld [vmem:[%s5 + $0x30] sm:$0xff]
  %v803 = vld [vmem:[%s5 + $0x38] sm:$0xff]
  %v804 = vld [vmem:[%s5 + $0x40] sm:$0xff]
  %v805 = vld [vmem:[%s5 + $0x48] sm:$0xff]
  %v806 = vld [vmem:[%s5 + $0x50] sm:$0xff]
  %v807 = vld [vmem:[%s5 + $0x58] sm:$0xff]
  %v808 = vld [vmem:[%s5 + $0x60] sm:$0xff]
  %v809 = vld [vmem:[%s5 + $0x68] sm:$0xff]
  %v810 = vld [vmem:[%s5 + $0x70] sm:$0xff]
  %v811 = vld [vmem:[%s5 + $0x78] sm:$0xff]
  %812 = vmatprep.subr.mxu0 0.0
  %813 = vmatpush1.msra.mxu0 %v811
  %814 = vmatprep.subr.mxu0 0.0
  %815 = vmatpush1.msra.mxu0 %v810
  %816 = vmatprep.subr.mxu0 0.0
  %817 = vmatpush1.msra.mxu0 %v809
  %818 = vmatprep.subr.mxu0 0.0
  %819 = vmatpush1.msra.mxu0 %v808
  %820 = vmatprep.subr.mxu0 0.0
  %821 = vmatpush1.msra.mxu0 %v807
  %822 = vmatprep.subr.mxu0 0.0
  %823 = vmatpush1.msra.mxu0 %v806
  %824 = vmatprep.subr.mxu0 0.0
  %825 = vmatpush1.msra.mxu0 %v805
  %826 = vmatprep.subr.mxu0 0.0
  %827 = vmatpush1.msra.mxu0 %v804
  %828 = vmatprep.subr.mxu0 0.0
  %829 = vmatpush1.msra.mxu0 %v803
  %830 = vmatprep.subr.mxu0 0.0
  %831 = vmatpush1.msra.mxu0 %v802
  %832 = vmatprep.subr.mxu0 0.0
  %833 = vmatpush1.msra.mxu0 %v801
  %834 = vmatprep.subr.mxu0 0.0
  %835 = vmatpush1.msra.mxu0 %v800
  %836 = vmatprep.subr.mxu0 0.0
  %837 = vmatpush1.msra.mxu0 %v799
  %838 = vmatprep.subr.mxu0 0.0
  %839 = vmatpush1.msra.mxu0 %v798
  %840 = vmatprep.subr.mxu0 0.0
  %841 = vmatpush1.msra.mxu0 %v797
  %842 = vmatprep.subr.mxu0 0.0
  %843 = vmatpush1.msra.mxu0 %v796
  %844 = vmatprep.subr.mxu0 0.0
  %845 = vmatpush2.msra.mxu0 0.0
  %846 = vmatprep.subr.mxu0 0.0
  %847 = vmatpush2.msra.mxu0 0.0
  %848 = vmatprep.subr.mxu0 0.0
  %849 = vmatpush2.msra.mxu0 0.0
  %850 = vmatprep.subr.mxu0 0.0
  %851 = vmatpush2.msra.mxu0 0.0
  %852 = vmatprep.subr.mxu0 0.0
  %853 = vmatpush2.msra.mxu0 0.0
  %854 = vmatprep.subr.mxu0 0.0
  %855 = vmatpush2.msra.mxu0 0.0
  %856 = vmatprep.subr.mxu0 0.0
  %857 = vmatpush2.msra.mxu0 0.0
  %858 = vmatprep.subr.mxu0 0.0
  %859 = vmatpush2.msra.mxu0 0.0
  %860 = vmatprep.subr.mxu0 0.0
  %861 = vmatpush2.msra.mxu0 0.0
  %862 = vmatprep.subr.mxu0 0.0
  %863 = vmatpush2.msra.mxu0 0.0
  %864 = vmatprep.subr.mxu0 0.0
  %865 = vmatpush2.msra.mxu0 0.0
  %866 = vmatprep.subr.mxu0 0.0
  %867 = vmatpush2.msra.mxu0 0.0
  %868 = vmatprep.subr.mxu0 0.0
  %869 = vmatpush2.msra.mxu0 0.0
  %870 = vmatprep.subr.mxu0 0.0
  %871 = vmatpush2.msra.mxu0 0.0
  %872 = vmatprep.subr.mxu0 0.0
  %873 = vmatpush2.msra.mxu0 0.0
  %874 = vmatprep.subr.mxu0 0.0
  %875 = vmatpush2.msra.mxu0 0.0
  %876 = vmatprep.mubr.f32.mxu0 0.0
  %877 = vmatmul.mubr.f32.gmra.mxu0 %v733
  %v878 = vpop.f32.mrf.mxu0
  %v879 = vadd.f32 0.0, %v878
  %v880 = vpop.f32.mrf.mxu0
  %881 = vmatprep.mubr.f32.mxu0 0.0
  %882 = vmatmul.mubr.f32.gmra.mxu0 %v734
  %v883 = vpop.f32.mrf.mxu0
  %v884 = vadd.f32 0.0, %v883
  %v885 = vpop.f32.mrf.mxu0
  %886 = vmatprep.mubr.f32.mxu0 0.0
  %887 = vmatmul.mubr.f32.gmra.mxu0 %v735
  %v888 = vpop.f32.mrf.mxu0
  %v889 = vadd.f32 0.0, %v888
  %v890 = vpop.f32.mrf.mxu0
  %891 = vmatprep.mubr.f32.mxu0 0.0
  %892 = vmatmul.mubr.f32.gmra.mxu0 %v736
  %v893 = vpop.f32.mrf.mxu0
  %v894 = vadd.f32 0.0, %v893
  %v895 = vpop.f32.mrf.mxu0
  %896 = vmatprep.mubr.f32.mxu0 0.0
  %897 = vmatmul.mubr.f32.gmra.mxu0 %v737
  %v898 = vpop.f32.mrf.mxu0
  %v899 = vadd.f32 0.0, %v898
  %v900 = vpop.f32.mrf.mxu0
  %901 = vmatprep.mubr.f32.mxu0 0.0
  %902 = vmatmul.mubr.f32.gmra.mxu0 %v738
  %v903 = vpop.f32.mrf.mxu0
  %v904 = vadd.f32 0.0, %v903
  %v905 = vpop.f32.mrf.mxu0
  %906 = vmatprep.mubr.f32.mxu0 0.0
  %907 = vmatmul.mubr.f32.gmra.mxu0 %v739
  %v908 = vpop.f32.mrf.mxu0
  %v909 = vadd.f32 0.0, %v908
  %v910 = vpop.f32.mrf.mxu0
  %911 = vmatprep.mubr.f32.mxu0 0.0
  %912 = vmatmul.mubr.f32.gmra.mxu0 %v740
  %v913 = vpop.f32.mrf.mxu0
  %v914 = vadd.f32 0.0, %v913
  %v915 = vpop.f32.mrf.mxu0
  %916 = vmatprep.mubr.f32.mxu0 0.0
  %917 = vmatmul.mubr.f32.gmra.mxu0 %v741
  %v918 = vpop.f32.mrf.mxu0
  %v919 = vadd.f32 0.0, %v918
  %v920 = vpop.f32.mrf.mxu0
  %921 = vmatprep.mubr.f32.mxu0 0.0
  %922 = vmatmul.mubr.f32.gmra.mxu0 %v742
  %v923 = vpop.f32.mrf.mxu0
  %v924 = vadd.f32 0.0, %v923
  %v925 = vpop.f32.mrf.mxu0
  %926 = vmatprep.mubr.f32.mxu0 0.0
  %927 = vmatmul.mubr.f32.gmra.mxu0 %v743
  %v928 = vpop.f32.mrf.mxu0
  %v929 = vadd.f32 0.0, %v928
  %v930 = vpop.f32.mrf.mxu0
  %931 = vmatprep.mubr.f32.mxu0 0.0
  %932 = vmatmul.mubr.f32.gmra.mxu0 %v744
  %v933 = vpop.f32.mrf.mxu0
  %v934 = vadd.f32 0.0, %v933
  %v935 = vpop.f32.mrf.mxu0
  %936 = vmatprep.mubr.f32.mxu0 0.0
  %937 = vmatmul.mubr.f32.gmra.mxu0 %v745
  %v938 = vpop.f32.mrf.mxu0
  %v939 = vadd.f32 0.0, %v938
  %v940 = vpop.f32.mrf.mxu0
  %941 = vmatprep.mubr.f32.mxu0 0.0
  %942 = vmatmul.mubr.f32.gmra.mxu0 %v746
  %v943 = vpop.f32.mrf.mxu0
  %v944 = vadd.f32 0.0, %v943
  %v945 = vpop.f32.mrf.mxu0
  %946 = vmatprep.mubr.f32.mxu0 0.0
  %947 = vmatmul.mubr.f32.gmra.mxu0 %v747
  %v948 = vpop.f32.mrf.mxu0
  %v949 = vadd.f32 0.0, %v948
  %v950 = vpop.f32.mrf.mxu0
  %951 = vmatprep.mubr.f32.mxu0 0.0
  %952 = vmatmul.mubr.f32.gmra.mxu0 %v748
  %v953 = vpop.f32.mrf.mxu0
  %v954 = vadd.f32 0.0, %v953
  %v955 = vpop.f32.mrf.mxu0
  %956 = vmatprep.mubr.f32.mxu0 0.0
  %957 = vmatmul.mubr.f32.gmra.mxu0 %v749
  %v958 = vpop.f32.mrf.mxu0
  %v959 = vadd.f32 0.0, %v958
  %v960 = vpop.f32.mrf.mxu0
  %961 = vmatprep.mubr.f32.mxu0 0.0
  %962 = vmatmul.mubr.f32.gmra.mxu0 %v750
  %v963 = vpop.f32.mrf.mxu0
  %v964 = vadd.f32 0.0, %v963
  %v965 = vpop.f32.mrf.mxu0
  %966 = vmatprep.mubr.f32.mxu0 0.0
  %967 = vmatmul.mubr.f32.gmra.mxu0 %v751
  %v968 = vpop.f32.mrf.mxu0
  %v969 = vadd.f32 0.0, %v968
  %v970 = vpop.f32.mrf.mxu0
  %971 = vmatprep.mubr.f32.mxu0 0.0
  %972 = vmatmul.mubr.f32.gmra.mxu0 %v752
  %v973 = vpop.f32.mrf.mxu0
  %v974 = vadd.f32 0.0, %v973
  %v975 = vpop.f32.mrf.mxu0
  %976 = vmatprep.mubr.f32.mxu0 0.0
  %977 = vmatmul.mubr.f32.gmra.mxu0 %v753
  %v978 = vpop.f32.mrf.mxu0
  %v979 = vadd.f32 0.0, %v978
  %v980 = vpop.f32.mrf.mxu0
  %981 = vmatprep.mubr.f32.mxu0 0.0
  %982 = vmatmul.mubr.f32.gmra.mxu0 %v754
  %v983 = vpop.f32.mrf.mxu0
  %v984 = vadd.f32 0.0, %v983
  %v985 = vpop.f32.mrf.mxu0
  %986 = vmatprep.mubr.f32.mxu0 0.0
  %987 = vmatmul.mubr.f32.gmra.mxu0 %v755
  %v988 = vpop.f32.mrf.mxu0
  %v989 = vadd.f32 0.0, %v988
  %v990 = vpop.f32.mrf.mxu0
  %991 = vmatprep.mubr.f32.mxu0 0.0
  %992 = vmatmul.mubr.f32.gmra.mxu0 %v756
  %v993 = vpop.f32.mrf.mxu0
  %v994 = vadd.f32 0.0, %v993
  %v995 = vpop.f32.mrf.mxu0
  %996 = vmatprep.mubr.f32.mxu0 0.0
  %997 = vmatmul.mubr.f32.gmra.mxu0 %v757
  %v998 = vpop.f32.mrf.mxu0
  %v999 = vadd.f32 0.0, %v998
  %v1000 = vpop.f32.mrf.mxu0
  %1001 = vmatprep.mubr.f32.mxu0 0.0
  %1002 = vmatmul.mubr.f32.gmra.mxu0 %v758
  %v1003 = vpop.f32.mrf.mxu0
  %v1004 = vadd.f32 0.0, %v1003
  %v1005 = vpop.f32.mrf.mxu0
  %1006 = vmatprep.mubr.f32.mxu0 0.0
  %1007 = vmatmul.mubr.f32.gmra.mxu0 %v759
  %v1008 = vpop.f32.mrf.mxu0
  %v1009 = vadd.f32 0.0, %v1008
  %v1010 = vpop.f32.mrf.mxu0
  %1011 = vmatprep.mubr.f32.mxu0 0.0
  %1012 = vmatmul.mubr.f32.gmra.mxu0 %v760
  %v1013 = vpop.f32.mrf.mxu0
  %v1014 = vadd.f32 0.0, %v1013
  %v1015 = vpop.f32.mrf.mxu0
  %1016 = vmatprep.mubr.f32.mxu0 0.0
  %1017 = vmatmul.mubr.f32.gmra.mxu0 %v761
  %v1018 = vpop.f32.mrf.mxu0
  %v1019 = vadd.f32 0.0, %v1018
  %v1020 = vpop.f32.mrf.mxu0
  %1021 = vmatprep.mubr.f32.mxu0 0.0
  %1022 = vmatmul.mubr.f32.gmra.mxu0 %v762
  %v1023 = vpop.f32.mrf.mxu0
  %v1024 = vadd.f32 0.0, %v1023
  %v1025 = vpop.f32.mrf.mxu0
  %1026 = vmatprep.mubr.f32.mxu0 0.0
  %1027 = vmatmul.mubr.f32.gmra.mxu0 %v763
  %v1028 = vpop.f32.mrf.mxu0
  %v1029 = vadd.f32 0.0, %v1028
  %v1030 = vpop.f32.mrf.mxu0
  %1031 = vmatprep.mubr.f32.mxu0 0.0
  %1032 = vmatmul.mubr.f32.gmra.mxu0 %v764
  %v1033 = vpop.f32.mrf.mxu0
  %v1034 = vadd.f32 0.0, %v1033
  %v1035 = vpop.f32.mrf.mxu0
  %1036 = vmatprep.mubr.f32.mxu0 0.0
  %1037 = vmatmul.mubr.f32.gmra.mxu0 %v765
  %v1038 = vpop.f32.mrf.mxu0
  %v1039 = vadd.f32 0.0, %v1038
  %v1040 = vpop.f32.mrf.mxu0
  %1041 = vmatprep.mubr.f32.mxu0 0.0
  %1042 = vmatmul.mubr.f32.gmra.mxu0 %v766
  %v1043 = vpop.f32.mrf.mxu0
  %v1044 = vadd.f32 0.0, %v1043
  %v1045 = vpop.f32.mrf.mxu0
  %1046 = vmatprep.mubr.f32.mxu0 0.0
  %1047 = vmatmul.mubr.f32.gmra.mxu0 %v767
  %v1048 = vpop.f32.mrf.mxu0
  %v1049 = vadd.f32 0.0, %v1048
  %v1050 = vpop.f32.mrf.mxu0
  %1051 = vmatprep.mubr.f32.mxu0 0.0
  %1052 = vmatmul.mubr.f32.gmra.mxu0 %v768
  %v1053 = vpop.f32.mrf.mxu0
  %v1054 = vadd.f32 0.0, %v1053
  %v1055 = vpop.f32.mrf.mxu0
  %1056 = vmatprep.mubr.f32.mxu0 0.0
  %1057 = vmatmul.mubr.f32.gmra.mxu0 %v769
  %v1058 = vpop.f32.mrf.mxu0
  %v1059 = vadd.f32 0.0, %v1058
  %v1060 = vpop.f32.mrf.mxu0
  %1061 = vmatprep.mubr.f32.mxu0 0.0
  %1062 = vmatmul.mubr.f32.gmra.mxu0 %v770
  %v1063 = vpop.f32.mrf.mxu0
  %v1064 = vadd.f32 0.0, %v1063
  %v1065 = vpop.f32.mrf.mxu0
  %1066 = vmatprep.mubr.f32.mxu0 0.0
  %1067 = vmatmul.mubr.f32.gmra.mxu0 %v771
  %v1068 = vpop.f32.mrf.mxu0
  %v1069 = vadd.f32 0.0, %v1068
  %v1070 = vpop.f32.mrf.mxu0
  %1071 = vmatprep.mubr.f32.mxu0 0.0
  %1072 = vmatmul.mubr.f32.gmra.mxu0 %v772
  %v1073 = vpop.f32.mrf.mxu0
  %v1074 = vadd.f32 0.0, %v1073
  %v1075 = vpop.f32.mrf.mxu0
  %1076 = vmatprep.mubr.f32.mxu0 0.0
  %1077 = vmatmul.mubr.f32.gmra.mxu0 %v773
  %v1078 = vpop.f32.mrf.mxu0
  %v1079 = vadd.f32 0.0, %v1078
  %v1080 = vpop.f32.mrf.mxu0
  %1081 = vmatprep.mubr.f32.mxu0 0.0
  %1082 = vmatmul.mubr.f32.gmra.mxu0 %v774
  %v1083 = vpop.f32.mrf.mxu0
  %v1084 = vadd.f32 0.0, %v1083
  %v1085 = vpop.f32.mrf.mxu0
  %1086 = vmatprep.mubr.f32.mxu0 0.0
  %1087 = vmatmul.mubr.f32.gmra.mxu0 %v775
  %v1088 = vpop.f32.mrf.mxu0
  %v1089 = vadd.f32 0.0, %v1088
  %v1090 = vpop.f32.mrf.mxu0
  %1091 = vmatprep.mubr.f32.mxu0 0.0
  %1092 = vmatmul.mubr.f32.gmra.mxu0 %v776
  %v1093 = vpop.f32.mrf.mxu0
  %v1094 = vadd.f32 0.0, %v1093
  %v1095 = vpop.f32.mrf.mxu0
  %1096 = vmatprep.mubr.f32.mxu0 0.0
  %1097 = vmatmul.mubr.f32.gmra.mxu0 %v777
  %v1098 = vpop.f32.mrf.mxu0
  %v1099 = vadd.f32 0.0, %v1098
  %v1100 = vpop.f32.mrf.mxu0
  %1101 = vmatprep.mubr.f32.mxu0 0.0
  %1102 = vmatmul.mubr.f32.gmra.mxu0 %v778
  %v1103 = vpop.f32.mrf.mxu0
  %v1104 = vadd.f32 0.0, %v1103
  %v1105 = vpop.f32.mrf.mxu0
  %1106 = vmatprep.mubr.f32.mxu0 0.0
  %1107 = vmatmul.mubr.f32.gmra.mxu0 %v779
  %v1108 = vpop.f32.mrf.mxu0
  %v1109 = vadd.f32 0.0, %v1108
  %v1110 = vpop.f32.mrf.mxu0
  %1111 = vmatprep.mubr.f32.mxu0 0.0
  %1112 = vmatmul.mubr.f32.gmra.mxu0 %v780
  %v1113 = vpop.f32.mrf.mxu0
  %v1114 = vadd.f32 0.0, %v1113
  %v1115 = vpop.f32.mrf.mxu0
  %1116 = vmatprep.mubr.f32.mxu0 0.0
  %1117 = vmatmul.mubr.f32.gmra.mxu0 %v781
  %v1118 = vpop.f32.mrf.mxu0
  %v1119 = vadd.f32 0.0, %v1118
  %v1120 = vpop.f32.mrf.mxu0
  %1121 = vmatprep.mubr.f32.mxu0 0.0
  %1122 = vmatmul.mubr.f32.gmra.mxu0 %v782
  %v1123 = vpop.f32.mrf.mxu0
  %v1124 = vadd.f32 0.0, %v1123
  %v1125 = vpop.f32.mrf.mxu0
  %1126 = vmatprep.mubr.f32.mxu0 0.0
  %1127 = vmatmul.mubr.f32.gmra.mxu0 %v783
  %v1128 = vpop.f32.mrf.mxu0
  %v1129 = vadd.f32 0.0, %v1128
  %v1130 = vpop.f32.mrf.mxu0
  %1131 = vmatprep.mubr.f32.mxu0 0.0
  %1132 = vmatmul.mubr.f32.gmra.mxu0 %v784
  %v1133 = vpop.f32.mrf.mxu0
  %v1134 = vadd.f32 0.0, %v1133
  %v1135 = vpop.f32.mrf.mxu0
  %1136 = vmatprep.mubr.f32.mxu0 0.0
  %1137 = vmatmul.mubr.f32.gmra.mxu0 %v785
  %v1138 = vpop.f32.mrf.mxu0
  %v1139 = vadd.f32 0.0, %v1138
  %v1140 = vpop.f32.mrf.mxu0
  %1141 = vmatprep.mubr.f32.mxu0 0.0
  %1142 = vmatmul.mubr.f32.gmra.mxu0 %v786
  %v1143 = vpop.f32.mrf.mxu0
  %v1144 = vadd.f32 0.0, %v1143
  %v1145 = vpop.f32.mrf.mxu0
  %1146 = vmatprep.mubr.f32.mxu0 0.0
  %1147 = vmatmul.mubr.f32.gmra.mxu0 %v787
  %v1148 = vpop.f32.mrf.mxu0
  %v1149 = vadd.f32 0.0, %v1148
  %v1150 = vpop.f32.mrf.mxu0
  %1151 = vmatprep.mubr.f32.mxu0 0.0
  %1152 = vmatmul.mubr.f32.gmra.mxu0 %v788
  %v1153 = vpop.f32.mrf.mxu0
  %v1154 = vadd.f32 0.0, %v1153
  %v1155 = vpop.f32.mrf.mxu0
  %1156 = vmatprep.mubr.f32.mxu0 0.0
  %1157 = vmatmul.mubr.f32.gmra.mxu0 %v789
  %v1158 = vpop.f32.mrf.mxu0
  %v1159 = vadd.f32 0.0, %v1158
  %v1160 = vpop.f32.mrf.mxu0
  %1161 = vmatprep.mubr.f32.mxu0 0.0
  %1162 = vmatmul.mubr.f32.gmra.mxu0 %v790
  %v1163 = vpop.f32.mrf.mxu0
  %v1164 = vadd.f32 0.0, %v1163
  %v1165 = vpop.f32.mrf.mxu0
  %1166 = vmatprep.mubr.f32.mxu0 0.0
  %1167 = vmatmul.mubr.f32.gmra.mxu0 %v791
  %v1168 = vpop.f32.mrf.mxu0
  %v1169 = vadd.f32 0.0, %v1168
  %v1170 = vpop.f32.mrf.mxu0
  %1171 = vmatprep.mubr.f32.mxu0 0.0
  %1172 = vmatmul.mubr.f32.gmra.mxu0 %v792
  %v1173 = vpop.f32.mrf.mxu0
  %v1174 = vadd.f32 0.0, %v1173
  %v1175 = vpop.f32.mrf.mxu0
  %1176 = vmatprep.mubr.f32.mxu0 0.0
  %1177 = vmatmul.mubr.f32.gmra.mxu0 %v793
  %v1178 = vpop.f32.mrf.mxu0
  %v1179 = vadd.f32 0.0, %v1178
  %v1180 = vpop.f32.mrf.mxu0
  %1181 = vmatprep.mubr.f32.mxu0 0.0
  %1182 = vmatmul.mubr.f32.gmra.mxu0 %v794
  %v1183 = vpop.f32.mrf.mxu0
  %v1184 = vadd.f32 0.0, %v1183
  %v1185 = vpop.f32.mrf.mxu0
  %1186 = vmatprep.mubr.f32.mxu0 0.0
  %1187 = vmatmul.mubr.f32.gmra.mxu0 %v795
  %v1188 = vpop.f32.mrf.mxu0
  %v1189 = vadd.f32 0.0, %v1188
  %v1190 = vpop.f32.mrf.mxu0
  %1191 = vdwg.mxu0
  %vm1192 = vcmask 261120
  %1193 = vst.msk [vmem:[%s6] sm:$0xff] %vm1192, %v879
  %1194 = vst.msk [vmem:[%s6 + $0x8] sm:$0xff] %vm1192, %v884
  %1195 = vst.msk [vmem:[%s6 + $0x10] sm:$0xff] %vm1192, %v889
  %1196 = vst.msk [vmem:[%s6 + $0x18] sm:$0xff] %vm1192, %v894
  %1197 = vst.msk [vmem:[%s6 + $0x20] sm:$0xff] %vm1192, %v899
  %1198 = vst.msk [vmem:[%s6 + $0x28] sm:$0xff] %vm1192, %v904
  %1199 = vst.msk [vmem:[%s6 + $0x30] sm:$0xff] %vm1192, %v909
  %1200 = vst.msk [vmem:[%s6 + $0x38] sm:$0xff] %vm1192, %v914
  %1201 = vst.msk [vmem:[%s6 + $0x40] sm:$0xff] %vm1192, %v919
  %1202 = vst.msk [vmem:[%s6 + $0x48] sm:$0xff] %vm1192, %v924
  %1203 = vst.msk [vmem:[%s6 + $0x50] sm:$0xff] %vm1192, %v929
  %1204 = vst.msk [vmem:[%s6 + $0x58] sm:$0xff] %vm1192, %v934
  %1205 = vst.msk [vmem:[%s6 + $0x60] sm:$0xff] %vm1192, %v939
  %1206 = vst.msk [vmem:[%s6 + $0x68] sm:$0xff] %vm1192, %v944
  %1207 = vst.msk [vmem:[%s6 + $0x70] sm:$0xff] %vm1192, %v949
  %1208 = vst.msk [vmem:[%s6 + $0x78] sm:$0xff] %vm1192, %v954
  %1209 = vst.msk [vmem:[%s6 + $0x80] sm:$0xff] %vm1192, %v959
  %1210 = vst.msk [vmem:[%s6 + $0x88] sm:$0xff] %vm1192, %v964
  %1211 = vst.msk [vmem:[%s6 + $0x90] sm:$0xff] %vm1192, %v969
  %1212 = vst.msk [vmem:[%s6 + $0x98] sm:$0xff] %vm1192, %v974
  %1213 = vst.msk [vmem:[%s6 + $0xa0] sm:$0xff] %vm1192, %v979
  %1214 = vst.msk [vmem:[%s6 + $0xa8] sm:$0xff] %vm1192, %v984
  %1215 = vst.msk [vmem:[%s6 + $0xb0] sm:$0xff] %vm1192, %v989
  %1216 = vst.msk [vmem:[%s6 + $0xb8] sm:$0xff] %vm1192, %v994
  %1217 = vst.msk [vmem:[%s6 + $0xc0] sm:$0xff] %vm1192, %v999
  %1218 = vst.msk [vmem:[%s6 + $0xc8] sm:$0xff] %vm1192, %v1004
  %1219 = vst.msk [vmem:[%s6 + $0xd0] sm:$0xff] %vm1192, %v1009
  %1220 = vst.msk [vmem:[%s6 + $0xd8] sm:$0xff] %vm1192, %v1014
  %1221 = vst.msk [vmem:[%s6 + $0xe0] sm:$0xff] %vm1192, %v1019
  %1222 = vst.msk [vmem:[%s6 + $0xe8] sm:$0xff] %vm1192, %v1024
  %1223 = vst.msk [vmem:[%s6 + $0xf0] sm:$0xff] %vm1192, %v1029
  %1224 = vst.msk [vmem:[%s6 + $0xf8] sm:$0xff] %vm1192, %v1034
  %1225 = vst.msk [vmem:[%s6 + $0x100] sm:$0xff] %vm1192, %v1039
  %1226 = vst.msk [vmem:[%s6 + $0x108] sm:$0xff] %vm1192, %v1044
  %1227 = vst.msk [vmem:[%s6 + $0x110] sm:$0xff] %vm1192, %v1049
  %1228 = vst.msk [vmem:[%s6 + $0x118] sm:$0xff] %vm1192, %v1054
  %1229 = vst.msk [vmem:[%s6 + $0x120] sm:$0xff] %vm1192, %v1059
  %1230 = vst.msk [vmem:[%s6 + $0x128] sm:$0xff] %vm1192, %v1064
  %1231 = vst.msk [vmem:[%s6 + $0x130] sm:$0xff] %vm1192, %v1069
  %1232 = vst.msk [vmem:[%s6 + $0x138] sm:$0xff] %vm1192, %v1074
  %1233 = vst.msk [vmem:[%s6 + $0x140] sm:$0xff] %vm1192, %v1079
  %1234 = vst.msk [vmem:[%s6 + $0x148] sm:$0xff] %vm1192, %v1084
  %1235 = vst.msk [vmem:[%s6 + $0x150] sm:$0xff] %vm1192, %v1089
  %1236 = vst.msk [vmem:[%s6 + $0x158] sm:$0xff] %vm1192, %v1094
  %1237 = vst.msk [vmem:[%s6 + $0x160] sm:$0xff] %vm1192, %v1099
  %1238 = vst.msk [vmem:[%s6 + $0x168] sm:$0xff] %vm1192, %v1104
  %1239 = vst.msk [vmem:[%s6 + $0x170] sm:$0xff] %vm1192, %v1109
  %1240 = vst.msk [vmem:[%s6 + $0x178] sm:$0xff] %vm1192, %v1114
  %1241 = vst.msk [vmem:[%s6 + $0x180] sm:$0xff] %vm1192, %v1119
  %1242 = vst.msk [vmem:[%s6 + $0x188] sm:$0xff] %vm1192, %v1124
  %1243 = vst.msk [vmem:[%s6 + $0x190] sm:$0xff] %vm1192, %v1129
  %1244 = vst.msk [vmem:[%s6 + $0x198] sm:$0xff] %vm1192, %v1134
  %1245 = vst.msk [vmem:[%s6 + $0x1a0] sm:$0xff] %vm1192, %v1139
  %1246 = vst.msk [vmem:[%s6 + $0x1a8] sm:$0xff] %vm1192, %v1144
  %1247 = vst.msk [vmem:[%s6 + $0x1b0] sm:$0xff] %vm1192, %v1149
  %1248 = vst.msk [vmem:[%s6 + $0x1b8] sm:$0xff] %vm1192, %v1154
  %1249 = vst.msk [vmem:[%s6 + $0x1c0] sm:$0xff] %vm1192, %v1159
  %1250 = vst.msk [vmem:[%s6 + $0x1c8] sm:$0xff] %vm1192, %v1164
  %1251 = vst.msk [vmem:[%s6 + $0x1d0] sm:$0xff] %vm1192, %v1169
  %1252 = vst.msk [vmem:[%s6 + $0x1d8] sm:$0xff] %vm1192, %v1174
  %1253 = vst.msk [vmem:[%s6 + $0x1e0] sm:$0xff] %vm1192, %v1179
  %1254 = vst.msk [vmem:[%s6 + $0x1e8] sm:$0xff] %vm1192, %v1184
  %1255 = vst.msk [vmem:[%s6 + $0x1f0] sm:$0xff] %vm1192, %v1189
  // Predicated region
  $region26: #{attention_forward.1} parent=0 // pred_check
    _
  $region27: #{attention_forward.1} parent=0 // pred_check_branch
    %1257 = sbr.rel (0) target = $region29
  $region28: #{attention_forward.1} parent=0 // pred_region
    _
  $region29: #{attention_forward.1} parent=0 // pred_fallthru
    _
  // Predicated region
  $region30: #{attention_forward.1} parent=0 // pred_check
    _
  $region31: #{attention_forward.1} parent=0 // pred_check_branch
    %1259 = sbr.rel (0) target = $region33
  $region32: #{attention_forward.1} parent=0 // pred_region
    _
  $region33: #{attention_forward.1} parent=0 // pred_fallthru
    _

</llo_original>
